<compile_context>
chip_gen: v7x
topology: tpu7x:2x2x1
jax: 0.10.0
libtpu: 0.0.40
codegen_flags: <defaults>
</compile_context>

<pallas_src>
import jax
import jax.numpy as jnp
from jax.experimental import pallas as pl
from jax.experimental.pallas import tpu as pltpu


def _round_up(x, m):
    return (x + m - 1) // m * m


def _vmem_capacity_bytes():
    """Per-TensorCore VMEM (128 MiB on v5e/v6e, 64 MiB on v7x)."""
    try:
        cap = int(getattr(pltpu.get_tpu_info(), "vmem_capacity_bytes", 0))
        if cap > 0:
            return cap
    except Exception:
        pass
    return 64 << 20          # conservative fallback = smallest generation (v7x)


def cabasc_kernel(memory_ref, s_q_ref, inv_len_ref, lmask_ref,
                  wk_w1_ref, w_fused_ref, b_fused_ref, wd_ref, bd_ref, out_ref):
    # memory_ref: (TB, Lp, Ep) bf16 -- the only large, streamed operand.  It is
    # never upcast wholesale to f32: every full-size pass below is bf16, only
    # the small (TB, Lp) / (TB, Ep) results are carried in f32.
    mem = memory_ref[...]

    # Attention 'mlp' score, fused: score[b,l] = tanh(mem[b,l,:]@(w_kx@w1) + s_q[b]).
    # One packed-bf16 multiply pass + lane reduce.
    s_k = jnp.sum(mem * wk_w1_ref[...], axis=-1)                    # (TB, Lp) bf16
    score = jnp.tanh(s_k.astype(jnp.float32) + s_q_ref[...])        # (TB, Lp) f32
    # SqueezeEmbedding truncation: positions >= batch max_len get -1e9.
    score = score + lmask_ref[...]
    score = score - jnp.max(score, axis=-1, keepdims=True)
    p = jnp.exp(score)
    alpha = p * pl.reciprocal(jnp.sum(p, axis=-1, keepdims=True), approx=True)

    # Alpha-weighted memory sum and sentence summary, kept on the VPU in bf16.
    # (A batched MXU contraction was rejected: each (Lp,Ep) slice would be
    # pushed through the MXU for only 2 coefficient rows -> no weight reuse,
    # <=2/128 utilization; packed-bf16 VPU passes are faster and leave the MXU
    # free for the fused tail matmuls below.)
    alpha_b = alpha.astype(jnp.bfloat16)                            # (TB, Lp)
    m_w = jnp.sum(alpha_b[:, :, None] * mem, axis=1).astype(jnp.float32)   # (TB, Ep)
    v_s = jnp.sum(mem, axis=1).astype(jnp.float32) * inv_len_ref[...]      # (TB, Ep)

    # Fused tail (single K=2*Ep contraction instead of proj then mlp):
    #   v_ms = tanh([m_w | v_s] @ [[w_kx@w_proj.T@w_mlp.T], [w_mlp.T]] + b')
    v_cat = jnp.concatenate([m_w, v_s], axis=-1)                    # (TB, 2*Ep)
    v_ms = jnp.tanh(jnp.dot(v_cat, w_fused_ref[...],
                            preferred_element_type=jnp.float32) + b_fused_ref[...])
    logits = jnp.dot(v_ms, wd_ref[...],
                     preferred_element_type=jnp.float32) + bd_ref[...]     # (TB, Pp)
    # Padded logit columns carry a -1e9 bias -> exp underflows to exactly 0.
    logits = logits - jnp.max(logits, axis=-1, keepdims=True)
    el = jnp.exp(logits)
    out_ref[...] = el / jnp.sum(el, axis=-1, keepdims=True)


def _pick_batch_tile(B, Lp, Ep, vmem_cap):
    """Batch rows per grid step, generation-aware: the double-buffered bf16
    memory block (2*2 B/elem) plus ~2 live bf16 temporaries (2*2 B/elem) must
    fit in ~45% of this generation's VMEM; the rest is weights, outputs and
    compiler scratch."""
    bytes_per_row = Lp * Ep * (2 * 2 + 2 * 2)
    budget = int(vmem_cap * 0.45)
    tb = budget // max(bytes_per_row, 1)
    tb = max(8, min(1024, (tb // 8) * 8))
    tb = min(tb, _round_up(B, 8))
    # Rebalance so the last grid step is not mostly padding.
    nsteps = -(-B // tb)
    tb = _round_up(-(-B // nsteps), 8)
    return tb


def cabasc_forward(params, text_raw_indices, aspect_indices, x_l, x_r,
                   *, batch_tile=None):
    # x_l / x_r feed context_attention(), which is dead code in the literal
    # forward (builtin `type` shadowing) -> unused here.
    del x_l, x_r
    emb = params["embedding"]                         # (V, E) f32
    B, L = text_raw_indices.shape
    E = emb.shape[1]
    P = params["w_dense"].shape[0]

    Ep = _round_up(E, 128)      # lane-dense feature dim
    Lp = _round_up(L, 16)       # sublane-aligned key length (bf16 tiling)
    Pp = _round_up(P, 128)      # lane-dense logits / output

    memory_len = jnp.sum(text_raw_indices != 0, axis=-1)          # (B,)
    aspect_len = jnp.sum(aspect_indices != 0, axis=-1)            # (B,)
    max_len = jnp.max(memory_len)                                 # device scalar, no host sync

    # Tile sizing (generation-aware) and batch padding.
    vmem_cap = _vmem_capacity_bytes()
    if batch_tile is None:
        TB = _pick_batch_tile(B, Lp, Ep, vmem_cap)
    else:
        TB = min(max(8, _round_up(int(batch_tile), 8)), _round_up(B, 8))
    Bp = _round_up(B, TB)
    grid = (Bp // TB,)

    # SqueezeEmbedding memory: gather -> per-row zero mask -> pad, entirely in
    # bf16 (the f32 (B,L,E) tensor is never materialized), so wrapper-side HBM
    # traffic is ~2 B/elem, matching what the kernel streams.
    emb_b = emb.astype(jnp.bfloat16)
    memory = jnp.take(emb_b, text_raw_indices, axis=0)            # (B, L, E) bf16
    valid = jnp.arange(L)[None, :] < memory_len[:, None]
    memory = jnp.where(valid[:, :, None], memory, 0)
    memory_p = jnp.pad(memory, ((0, Bp - B), (0, Lp - L), (0, Ep - E)))

    # Aspect query x and its fused score contribution s_q (tiny; stays in XLA).
    # Rows with memory_len == 0 produce inf/NaN via 1/len (same as reference).
    x = jnp.sum(jnp.take(emb, aspect_indices, axis=0), axis=1) \
        / aspect_len.astype(jnp.float32)[:, None]                 # (B, E)
    w_score = params["w_score"]
    s_q = (x @ params["w_qx"]) @ w_score[E:]                      # (B,)

    # Fused weights (eliminates the B*L*E^2 kx matmul and merges proj+mlp):
    #   score path : w_kx @ w1                    -> (E,)   bf16
    #   m_w path   : (w_kx @ w_proj.T) @ w_mlp.T  -> (E, E)
    #   v_s path   : w_mlp.T                      -> (E, E)
    #   fused bias : b_proj @ w_mlp.T + b_mlp     -> (E,)
    wk_w1 = params["w_kx"] @ w_score[:E]
    wmT = params["w_mlp"].T
    w_top = (params["w_kx"] @ params["w_proj"].T) @ wmT
    b_fused = params["b_proj"] @ wmT + params["b_mlp"]

    s_q_p = jnp.pad(s_q.reshape(B, 1), ((0, Bp - B), (0, 0)))
    inv_len_p = jnp.pad((1.0 / memory_len.astype(jnp.float32)).reshape(B, 1),
                        ((0, Bp - B), (0, 0)))
    lmask = jnp.where(jnp.arange(Lp) < max_len, 0.0, -1e9)
    lmask = lmask.astype(jnp.float32).reshape(1, Lp)

    wk_w1_p = jnp.pad(wk_w1, (0, Ep - E)).reshape(1, 1, Ep).astype(jnp.bfloat16)
    w_fused_p = jnp.concatenate(
        [jnp.pad(w_top, ((0, Ep - E), (0, Ep - E))),
         jnp.pad(wmT, ((0, Ep - E), (0, Ep - E)))], axis=0)       # (2*Ep, Ep)
    b_fused_p = jnp.pad(b_fused, (0, Ep - E)).reshape(1, Ep)
    wd_p = jnp.pad(params["w_dense"].T, ((0, Ep - E), (0, Pp - P)))
    bd_p = jnp.pad(params["b_dense"], (0, Pp - P),
                   constant_values=-1e9).reshape(1, Pp)

    # TODO(synk): the grid-invariant weight blocks could carry
    # pipeline_mode=pl.Buffered(1) to drop their redundant second pipeline
    # buffer; left at the default and accounted for in the VMEM budget instead.
    in_specs = [
        pl.BlockSpec((TB, Lp, Ep), lambda i: (i, 0, 0)),   # memory (streamed bf16)
        pl.BlockSpec((TB, 1), lambda i: (i, 0)),           # s_q
        pl.BlockSpec((TB, 1), lambda i: (i, 0)),           # 1 / memory_len
        pl.BlockSpec((1, Lp), lambda i: (0, 0)),           # length mask
        pl.BlockSpec((1, 1, Ep), lambda i: (0, 0, 0)),     # w_kx @ w1 (bf16)
        pl.BlockSpec((2 * Ep, Ep), lambda i: (0, 0)),      # fused proj+mlp weight
        pl.BlockSpec((1, Ep), lambda i: (0, 0)),           # fused bias
        pl.BlockSpec((Ep, Pp), lambda i: (0, 0)),          # w_dense.T
        pl.BlockSpec((1, Pp), lambda i: (0, 0)),           # b_dense (-1e9 pad)
    ]
    out_spec = pl.BlockSpec((TB, Pp), lambda i: (i, 0))

    flops = Bp * Lp * Ep * 6 + Bp * Ep * (4 * Ep + 2 * Pp) + Bp * Lp * 6
    transcendentals = Bp * (2 * Lp + Ep + Pp)
    bytes_accessed = (Bp * Lp * Ep * 2 + Bp * Pp * 4 + Bp * 8
                      + (2 * Ep * Ep + Ep * Pp + 3 * Ep + Pp + Lp) * 4)

    vmem_est = (TB * Lp * Ep * 2 * (2 + 2)                 # in dbl-buffer + bf16 temps
                + (2 * Ep * Ep + Ep * Pp) * 4 * 2          # weight blocks (dbl-buffered)
                + TB * (3 * Ep + Pp) * 4                   # small f32 intermediates
                + TB * Pp * 4 * 2                          # output dbl-buffer
                + (4 << 20))                               # compiler headroom
    vmem_limit = int(min(int(vmem_cap * 0.75), max(32 << 20, vmem_est)))

    out = pl.pallas_call(
        cabasc_kernel,
        out_shape=jax.ShapeDtypeStruct((Bp, Pp), jnp.float32),
        grid=grid,
        in_specs=in_specs,
        out_specs=out_spec,
        compiler_params=pltpu.CompilerParams(
            dimension_semantics=("parallel",),     # megacore / 2-TC shardable
            vmem_limit_bytes=vmem_limit),
        cost_estimate=pl.CostEstimate(
            flops=int(flops),
            transcendentals=int(transcendentals),
            bytes_accessed=int(bytes_accessed)),
    )(memory_p, s_q_p, inv_len_p, lmask,
      wk_w1_p, w_fused_p, b_fused_p, wd_p, bd_p)

    return out[:B, :P]


def reference_forward(params, text_raw_indices, aspect_indices):
    """Pure-jnp reference of the literal torch forward (unfused, f32 math).
    The memory tensor is round-tripped through bf16 to match what the kernel
    streams; the kernel's bf16 products/accumulations stay within tolerance."""
    emb = params["embedding"]
    E = emb.shape[1]
    B, L = text_raw_indices.shape
    memory_len = jnp.sum(text_raw_indices != 0, axis=-1)
    aspect_len = jnp.sum(aspect_indices != 0, axis=-1).astype(jnp.float32)
    max_len = jnp.max(memory_len)
    memory = jnp.take(emb, text_raw_indices, axis=0)
    valid = jnp.arange(L)[None, :] < memory_len[:, None]
    memory = memory * valid[:, :, None].astype(emb.dtype)
    memory = memory.astype(jnp.bfloat16).astype(jnp.float32)
    x = jnp.sum(jnp.take(emb, aspect_indices, axis=0), axis=1) / aspect_len[:, None]
    v_s = jnp.sum(memory, axis=1) / memory_len.astype(jnp.float32)[:, None]
    kx = memory @ params["w_kx"]
    qx = x @ params["w_qx"]
    score = jnp.tanh(kx @ params["w_score"][:E] + (qx @ params["w_score"][E:])[:, None])
    # SqueezeEmbedding truncates to the batch max length.
    score = jnp.where(jnp.arange(L)[None, :] < max_len, score, -jnp.inf)
    alpha = jax.nn.softmax(score, axis=-1)
    attn = jnp.einsum("bl,ble->be", alpha, kx)
    v_ts = attn @ params["w_proj"].T + params["b_proj"]
    v_ns = v_ts + v_s
    v_ms = jnp.tanh(v_ns @ params["w_mlp"].T + params["b_mlp"])
    logits = v_ms @ params["w_dense"].T + params["b_dense"]
    return jax.nn.softmax(logits, axis=-1)


def init_params(key, vocab=24, embed_dim=32, polarities_dim=3):
    ks = jax.random.split(key, 9)
    E, Pdim = embed_dim, polarities_dim
    embedding = 0.1 * jax.random.normal(ks[0], (vocab, E), jnp.float32)
    embedding = embedding.at[0].set(0.0)              # padding row
    params = dict(
        embedding=embedding,
        w_kx=0.1 * jax.random.normal(ks[1], (E, E), jnp.float32),
        w_qx=0.1 * jax.random.normal(ks[2], (E, E), jnp.float32),
        w_score=0.1 * jax.random.normal(ks[3], (2 * E,), jnp.float32),
        w_proj=0.1 * jax.random.normal(ks[4], (E, E), jnp.float32),
        b_proj=0.01 * jax.random.normal(ks[5], (E,), jnp.float32),
        w_mlp=0.1 * jax.random.normal(ks[6], (E, E), jnp.float32),
        b_mlp=0.01 * jax.random.normal(ks[7], (E,), jnp.float32),
        w_dense=0.1 * jax.random.normal(ks[8], (Pdim, E), jnp.float32),
        b_dense=jnp.zeros((Pdim,), jnp.float32),
    )
    # TODO(synk): rnn_l/rnn_r (GRU), mlp_l/mlp_r, m_linear are declared in
    # __init__ but never executed by the literal forward (dead `type` branches).
    return params


if __name__ == "__main__":
    key = jax.random.PRNGKey(0)
    k_tok, k_asp, k_len, k_alen, k_par = jax.random.split(key, 5)

    B, L, La, Ll, Lr = 16, 12, 4, 6, 6
    vocab, E, P = 24, 32, 3

    # contiguous non-zero token prefixes, zero-padded (dataset convention)
    seq_lens = jax.random.randint(k_len, (B,), 3, L + 1, dtype=jnp.int32)
    asp_lens = jax.random.randint(k_alen, (B,), 1, La + 1, dtype=jnp.int32)
    toks = jax.random.randint(k_tok, (B, L), 1, vocab, dtype=jnp.int32)
    text_raw_indices = toks * (jnp.arange(L)[None, :] < seq_lens[:, None])
    atoks = jax.random.randint(k_asp, (B, La), 1, vocab, dtype=jnp.int32)
    aspect_indices = atoks * (jnp.arange(La)[None, :] < asp_lens[:, None])
    x_l = jnp.zeros((B, Ll), jnp.int32)   # unused (dead context_attention branch)
    x_r = jnp.zeros((B, Lr), jnp.int32)

    params = init_params(k_par, vocab=vocab, embed_dim=E, polarities_dim=P)

    fwd = jax.jit(cabasc_forward, static_argnames=("batch_tile",))
    # batch_tile=8 -> 2 grid steps, exercising the batch-tiled pipeline.
    out = fwd(params, text_raw_indices, aspect_indices, x_l, x_r, batch_tile=8)
    out = jax.block_until_ready(out)

    ref = reference_forward(params, text_raw_indices, aspect_indices)
    assert out.shape == (B, P)
    assert jnp.allclose(jnp.sum(out, axis=-1), 1.0, atol=1e-5)
    assert jnp.allclose(out, ref, rtol=2e-2, atol=5e-3), (out, ref)

    print("KERNEL_OK")
</pallas_src>

<mosaic_0001>
module attributes {stable_mosaic.version = 11 : i64} {
  func.func @cabasc_kernel(%arg0: i32, %arg1: memref<8x16x128xbf16, #tpu.memory_space<vmem>>, %arg2: memref<8x1xf32, #tpu.memory_space<vmem>>, %arg3: memref<8x1xf32, #tpu.memory_space<vmem>>, %arg4: memref<1x16xf32, #tpu.memory_space<vmem>>, %arg5: memref<1x1x128xbf16, #tpu.memory_space<vmem>>, %arg6: memref<256x128xf32, #tpu.memory_space<vmem>>, %arg7: memref<1x128xf32, #tpu.memory_space<vmem>>, %arg8: memref<128x128xf32, #tpu.memory_space<vmem>>, %arg9: memref<1x128xf32, #tpu.memory_space<vmem>>, %arg10: memref<8x128xf32, #tpu.memory_space<vmem>>) attributes {dimension_semantics = [#tpu.dimension_semantics<parallel>], iteration_bounds = array<i64: 2>, scalar_prefetch = 0 : i64, scratch_operands = 0 : i64, tpu.core_type = #tpu.core_type<tc>, window_params = [{transform_indices = @transform_0, window_bounds = array<i64: 8, 16, 128>}, {transform_indices = @transform_1, window_bounds = array<i64: 8, 1>}, {transform_indices = @transform_2, window_bounds = array<i64: 8, 1>}, {pipeline_mode = #tpu.pipeline_mode<synchronous>, transform_indices = @transform_3, window_bounds = array<i64: 1, 16>}, {pipeline_mode = #tpu.pipeline_mode<synchronous>, transform_indices = @transform_4, window_bounds = array<i64: 1, 1, 128>}, {pipeline_mode = #tpu.pipeline_mode<synchronous>, transform_indices = @transform_5, window_bounds = array<i64: 256, 128>}, {pipeline_mode = #tpu.pipeline_mode<synchronous>, transform_indices = @transform_6, window_bounds = array<i64: 1, 128>}, {pipeline_mode = #tpu.pipeline_mode<synchronous>, transform_indices = @transform_7, window_bounds = array<i64: 128, 128>}, {pipeline_mode = #tpu.pipeline_mode<synchronous>, transform_indices = @transform_8, window_bounds = array<i64: 1, 128>}, {transform_indices = @transform_9, window_bounds = array<i64: 8, 128>}]} {
    %c0 = arith.constant 0 : index
    %c0_0 = arith.constant 0 : index
    %c0_1 = arith.constant 0 : index
    %0 = vector.load %arg1[%c0, %c0_0, %c0_1] : memref<8x16x128xbf16, #tpu.memory_space<vmem>>, vector<8x16x128xbf16>
    %c0_2 = arith.constant 0 : index
    %c0_3 = arith.constant 0 : index
    %c0_4 = arith.constant 0 : index
    %1 = vector.load %arg5[%c0_2, %c0_3, %c0_4] : memref<1x1x128xbf16, #tpu.memory_space<vmem>>, vector<1x1x128xbf16>
    %2 = vector.broadcast %1 : vector<1x1x128xbf16> to vector<8x16x128xbf16>
    %3 = arith.mulf %0, %2 : vector<8x16x128xbf16>
    %4 = arith.extf %3 : vector<8x16x128xbf16> to vector<8x16x128xf32>
    %cst = arith.constant dense<0.000000e+00> : vector<8x16xf32>
    %5 = vector.multi_reduction <add>, %4, %cst [2] : vector<8x16x128xf32> to vector<8x16xf32>
    %6 = arith.truncf %5 : vector<8x16xf32> to vector<8x16xbf16>
    %7 = arith.extf %6 : vector<8x16xbf16> to vector<8x16xf32>
    %c0_5 = arith.constant 0 : index
    %c0_6 = arith.constant 0 : index
    %8 = vector.load %arg2[%c0_5, %c0_6] : memref<8x1xf32, #tpu.memory_space<vmem>>, vector<8x1xf32>
    %9 = vector.broadcast %8 : vector<8x1xf32> to vector<8x16xf32>
    %10 = arith.addf %7, %9 : vector<8x16xf32>
    %11 = math.tanh %10 : vector<8x16xf32>
    %c0_7 = arith.constant 0 : index
    %c0_8 = arith.constant 0 : index
    %12 = vector.load %arg4[%c0_7, %c0_8] : memref<1x16xf32, #tpu.memory_space<vmem>>, vector<1x16xf32>
    %13 = vector.broadcast %12 : vector<1x16xf32> to vector<8x16xf32>
    %14 = arith.addf %11, %13 : vector<8x16xf32>
    %cst_9 = arith.constant dense<0xFF800000> : vector<8xf32>
    %15 = vector.multi_reduction <maximumf>, %14, %cst_9 [1] : vector<8x16xf32> to vector<8xf32>
    %16 = vector.shape_cast %15 : vector<8xf32> to vector<8x1xf32>
    %17 = vector.broadcast %16 : vector<8x1xf32> to vector<8x16xf32>
    %18 = arith.subf %14, %17 : vector<8x16xf32>
    %19 = math.exp %18 : vector<8x16xf32>
    %cst_10 = arith.constant dense<0.000000e+00> : vector<8xf32>
    %20 = vector.multi_reduction <add>, %19, %cst_10 [1] : vector<8x16xf32> to vector<8xf32>
    %21 = vector.shape_cast %20 : vector<8xf32> to vector<8x1xf32>
    %22 = tpu.reciprocal %21 {approx = true} : vector<8x1xf32> -> vector<8x1xf32>
    %23 = vector.broadcast %22 : vector<8x1xf32> to vector<8x16xf32>
    %24 = arith.mulf %19, %23 : vector<8x16xf32>
    %25 = arith.truncf %24 : vector<8x16xf32> to vector<8x16xbf16>
    %26 = vector.shape_cast %25 : vector<8x16xbf16> to vector<8x16x1xbf16>
    %27 = vector.broadcast %26 : vector<8x16x1xbf16> to vector<8x16x128xbf16>
    %28 = arith.mulf %27, %0 : vector<8x16x128xbf16>
    %29 = arith.extf %28 : vector<8x16x128xbf16> to vector<8x16x128xf32>
    %cst_11 = arith.constant dense<0.000000e+00> : vector<8x128xf32>
    %30 = vector.multi_reduction <add>, %29, %cst_11 [1] : vector<8x16x128xf32> to vector<8x128xf32>
    %31 = arith.truncf %30 : vector<8x128xf32> to vector<8x128xbf16>
    %32 = arith.extf %31 : vector<8x128xbf16> to vector<8x128xf32>
    %33 = arith.extf %0 : vector<8x16x128xbf16> to vector<8x16x128xf32>
    %cst_12 = arith.constant dense<0.000000e+00> : vector<8x128xf32>
    %34 = vector.multi_reduction <add>, %33, %cst_12 [1] : vector<8x16x128xf32> to vector<8x128xf32>
    %35 = arith.truncf %34 : vector<8x128xf32> to vector<8x128xbf16>
    %36 = arith.extf %35 : vector<8x128xbf16> to vector<8x128xf32>
    %c0_13 = arith.constant 0 : index
    %c0_14 = arith.constant 0 : index
    %37 = vector.load %arg3[%c0_13, %c0_14] : memref<8x1xf32, #tpu.memory_space<vmem>>, vector<8x1xf32>
    %38 = vector.broadcast %37 : vector<8x1xf32> to vector<8x128xf32>
    %39 = arith.mulf %36, %38 : vector<8x128xf32>
    %40 = tpu.concatenate %32, %39 in 1 : vector<8x128xf32>, vector<8x128xf32> -> vector<8x256xf32>
    %c0_15 = arith.constant 0 : index
    %c0_16 = arith.constant 0 : index
    %41 = vector.load %arg6[%c0_15, %c0_16] : memref<256x128xf32, #tpu.memory_space<vmem>>, vector<256x128xf32>
    %cst_17 = arith.constant dense<0.000000e+00> : vector<8x128xf32>
    %42 = tpu.matmul %40, %41, %cst_17 {dimension_numbers = #tpu.dot_dimension_numbers<[1], [0], [0], [1], [0, 0, 1, 1], [], []>} : vector<8x256xf32>, vector<256x128xf32>, vector<8x128xf32> -> vector<8x128xf32>
    %c0_18 = arith.constant 0 : index
    %c0_19 = arith.constant 0 : index
    %43 = vector.load %arg7[%c0_18, %c0_19] : memref<1x128xf32, #tpu.memory_space<vmem>>, vector<1x128xf32>
    %44 = vector.broadcast %43 : vector<1x128xf32> to vector<8x128xf32>
    %45 = arith.addf %42, %44 : vector<8x128xf32>
    %46 = math.tanh %45 : vector<8x128xf32>
    %c0_20 = arith.constant 0 : index
    %c0_21 = arith.constant 0 : index
    %47 = vector.load %arg8[%c0_20, %c0_21] : memref<128x128xf32, #tpu.memory_space<vmem>>, vector<128x128xf32>
    %cst_22 = arith.constant dense<0.000000e+00> : vector<8x128xf32>
    %48 = tpu.matmul %46, %47, %cst_22 {dimension_numbers = #tpu.dot_dimension_numbers<[1], [0], [0], [1], [0, 0, 1, 1], [], []>} : vector<8x128xf32>, vector<128x128xf32>, vector<8x128xf32> -> vector<8x128xf32>
    %c0_23 = arith.constant 0 : index
    %c0_24 = arith.constant 0 : index
    %49 = vector.load %arg9[%c0_23, %c0_24] : memref<1x128xf32, #tpu.memory_space<vmem>>, vector<1x128xf32>
    %50 = vector.broadcast %49 : vector<1x128xf32> to vector<8x128xf32>
    %51 = arith.addf %48, %50 : vector<8x128xf32>
    %cst_25 = arith.constant dense<0xFF800000> : vector<8xf32>
    %52 = vector.multi_reduction <maximumf>, %51, %cst_25 [1] : vector<8x128xf32> to vector<8xf32>
    %53 = vector.shape_cast %52 : vector<8xf32> to vector<8x1xf32>
    %54 = vector.broadcast %53 : vector<8x1xf32> to vector<8x128xf32>
    %55 = arith.subf %51, %54 : vector<8x128xf32>
    %56 = math.exp %55 : vector<8x128xf32>
    %cst_26 = arith.constant dense<0.000000e+00> : vector<8xf32>
    %57 = vector.multi_reduction <add>, %56, %cst_26 [1] : vector<8x128xf32> to vector<8xf32>
    %58 = vector.shape_cast %57 : vector<8xf32> to vector<8x1xf32>
    %59 = vector.broadcast %58 : vector<8x1xf32> to vector<8x128xf32>
    %60 = arith.divf %56, %59 : vector<8x128xf32>
    %c0_27 = arith.constant 0 : index
    %c0_28 = arith.constant 0 : index
    %61 = vector.load %arg10[%c0_27, %c0_28] : memref<8x128xf32, #tpu.memory_space<vmem>>, vector<8x128xf32>
    tpu.vector_store %arg10[%c0_27, %c0_28], %60 {strides = array<i32>} : memref<8x128xf32, #tpu.memory_space<vmem>>, vector<8x128xf32>,
    return
  }
  func.func @transform_0(%arg0: i32) -> (i32, i32, i32) {
    %c0_i32 = arith.constant 0 : i32
    %c0_i32_0 = arith.constant 0 : i32
    %c0_i32_1 = arith.constant 0 : i32
    return %arg0, %c0_i32, %c0_i32_0 : i32, i32, i32
  }
  func.func @transform_1(%arg0: i32) -> (i32, i32) {
    %c0_i32 = arith.constant 0 : i32
    %c0_i32_0 = arith.constant 0 : i32
    return %arg0, %c0_i32 : i32, i32
  }
  func.func @transform_2(%arg0: i32) -> (i32, i32) {
    %c0_i32 = arith.constant 0 : i32
    %c0_i32_0 = arith.constant 0 : i32
    return %arg0, %c0_i32 : i32, i32
  }
  func.func @transform_3(%arg0: i32) -> (i32, i32) {
    %c0_i32 = arith.constant 0 : i32
    %c0_i32_0 = arith.constant 0 : i32
    %c0_i32_1 = arith.constant 0 : i32
    return %c0_i32, %c0_i32_0 : i32, i32
  }
  func.func @transform_4(%arg0: i32) -> (i32, i32, i32) {
    %c0_i32 = arith.constant 0 : i32
    %c0_i32_0 = arith.constant 0 : i32
    %c0_i32_1 = arith.constant 0 : i32
    %c0_i32_2 = arith.constant 0 : i32
    return %c0_i32, %c0_i32_0, %c0_i32_1 : i32, i32, i32
  }
  func.func @transform_5(%arg0: i32) -> (i32, i32) {
    %c0_i32 = arith.constant 0 : i32
    %c0_i32_0 = arith.constant 0 : i32
    %c0_i32_1 = arith.constant 0 : i32
    return %c0_i32, %c0_i32_0 : i32, i32
  }
  func.func @transform_6(%arg0: i32) -> (i32, i32) {
    %c0_i32 = arith.constant 0 : i32
    %c0_i32_0 = arith.constant 0 : i32
    %c0_i32_1 = arith.constant 0 : i32
    return %c0_i32, %c0_i32_0 : i32, i32
  }
  func.func @transform_7(%arg0: i32) -> (i32, i32) {
    %c0_i32 = arith.constant 0 : i32
    %c0_i32_0 = arith.constant 0 : i32
    %c0_i32_1 = arith.constant 0 : i32
    return %c0_i32, %c0_i32_0 : i32, i32
  }
  func.func @transform_8(%arg0: i32) -> (i32, i32) {
    %c0_i32 = arith.constant 0 : i32
    %c0_i32_0 = arith.constant 0 : i32
    %c0_i32_1 = arith.constant 0 : i32
    return %c0_i32, %c0_i32_0 : i32, i32
  }
  func.func @transform_9(%arg0: i32) -> (i32, i32) {
    %c0_i32 = arith.constant 0 : i32
    %c0_i32_0 = arith.constant 0 : i32
    return %arg0, %c0_i32 : i32, i32
  }
}

</mosaic_0001>

<llo_original>
// kernel: cabasc_forward.1
$region0: #{cabasc_forward.1}
  #allocation0 [shape = 'u32[]', space=smem, size = 0x4, offset = 0x4, fixed_abs, tag = 'smem constant byte address 0x4 - core index']
  #allocation1 [shape = 'u32[144,128]{1,0:T(1,128)}', space=vmem, size = 0x12000, scoped, tag = 'internal scratch']
  %s0 = inlined_call_operand.vmem [shape: bf16[16,16,128], index: 0, kind: input, shape index: {}]
  %s1 = inlined_call_operand.vmem [shape: f32[16,1], index: 1, kind: input, shape index: {}]
  %s2 = inlined_call_operand.vmem [shape: f32[16,1], index: 2, kind: input, shape index: {}]
  %s3 = inlined_call_operand.vmem [shape: f32[1,16], index: 3, kind: input, shape index: {}]
  %s4 = inlined_call_operand.vmem [shape: bf16[1,1,128], index: 4, kind: input, shape index: {}]
  %s5 = inlined_call_operand.vmem [shape: f32[256,128], index: 5, kind: input, shape index: {}]
  %s6 = inlined_call_operand.vmem [shape: f32[1,128], index: 6, kind: input, shape index: {}]
  %s7 = inlined_call_operand.vmem [shape: f32[128,128], index: 7, kind: input, shape index: {}]
  %s8 = inlined_call_operand.vmem [shape: f32[1,128], index: 8, kind: input, shape index: {}]
  %s9 = inlined_call_operand.vmem [shape: f32[16,128], index: 9, kind: output, shape index: {}]
  %s10 = sld [smem:[#allocation0]]
  $region69: #{cabasc_forward.1} parent=0
    _
  %s12 = ssub.s32 1, %s10
  %s13 = scalar_select 0, %s12, %s10
  loop: start=0, step=1, limit=4
  $region2: #{cabasc_forward.1} parent=0 // loop_pre_header
    _
  $region3: #{cabasc_forward.1} parent=0 // loop_header
    %s15 = sphi 0, %s19
    %p16 = scmp.ge.s32.totalorder %s15, 4
    %s25 = sphi 0, %s27
    %s28 = sphi 0, %s25
    %s29 = sphi 0, %s28
    %s45 = sphi 0, %s29
    %s51 = sphi 0, %s53
    %s54 = sphi 0, %s51
    %s55 = sphi 0, %s54
    %s71 = sphi 0, %s55
    %s77 = sphi 0, %s79
    %s80 = sphi 0, %s77
    %s81 = sphi 0, %s80
    %s97 = sphi 0, %s81
    %s101 = sphi 0, %s101
    %s103 = sphi 0, %s101
    %s104 = sphi 0, %s103
    %s118 = sphi 0, %s104
    %s122 = sphi 0, %s122
    %s124 = sphi 0, %s122
    %s125 = sphi 0, %s124
    %s139 = sphi 0, %s125
    %s143 = sphi 0, %s143
    %s145 = sphi 0, %s143
    %s146 = sphi 0, %s145
    %s160 = sphi 0, %s146
    %s164 = sphi 0, %s164
    %s166 = sphi 0, %s164
    %s167 = sphi 0, %s166
    %s181 = sphi 0, %s167
    %s185 = sphi 0, %s185
    %s187 = sphi 0, %s185
    %s188 = sphi 0, %s187
    %s202 = sphi 0, %s188
    %s206 = sphi 0, %s206
    %s208 = sphi 0, %s206
    %s209 = sphi 0, %s208
    %s223 = sphi 0, %s209
    %s229 = sphi 0, %s231
    %s232 = sphi 0, %s229
    %s233 = sphi 0, %s232
    %s249 = sphi 0, %s233
  $region4: #{cabasc_forward.1} parent=0 // loop_header_branch
    %18 = sbr.rel (%p16) target = $region8
  $region5: #{cabasc_forward.1} parent=0 // loop_body
    %s20 = ssub.s32 %s15, 1
    %s21 = ssub.s32 %s15, 2
    %s22 = sadd.s32 %s15, 1
    %s23 = ssub.s32 %s15, %s22
    %p24 = scmp.eq.s32.totalorder %s23, 0
    %s26 = sadd.s32 %s25, 1
    %s27 = scalar_select %p24, %s25, %s26
    %p30 = pneg %p24
    %p31 = scmp.eq.s32.totalorder %s15, 1
    %p32 = por %p30, %p31
    %p33 = scmp.ne.s32.totalorder %s25, %s28
    %p34 = scmp.eq.s32.totalorder %s15, 0
    %p35 = por %p33, %p34
    %p36 = scmp.ne.s32.totalorder %s25, %s28
    %p37 = scmp.eq.s32.totalorder %s20, 1
    %p38 = por %p36, %p37
    %p39 = scmp.ne.s32.totalorder %s28, %s29
    %p40 = scmp.eq.s32.totalorder %s20, 0
    %p41 = por %p39, %p40
    %p42 = scmp.ne.s32.totalorder %s28, %s29
    %p43 = scmp.eq.s32.totalorder %s21, 1
    %p44 = por %p42, %p43
    %p46 = scmp.ne.s32.totalorder %s29, %s45
    %p47 = scmp.eq.s32.totalorder %s21, 0
    %p48 = por %p46, %p47
    %s49 = ssub.s32 %s15, %s22
    %p50 = scmp.eq.s32.totalorder %s49, 0
    %s52 = sadd.s32 %s51, 1
    %s53 = scalar_select %p50, %s51, %s52
    %p56 = pneg %p50
    %p57 = scmp.eq.s32.totalorder %s15, 1
    %p58 = por %p56, %p57
    %p59 = scmp.ne.s32.totalorder %s51, %s54
    %p60 = scmp.eq.s32.totalorder %s15, 0
    %p61 = por %p59, %p60
    %p62 = scmp.ne.s32.totalorder %s51, %s54
    %p63 = scmp.eq.s32.totalorder %s20, 1
    %p64 = por %p62, %p63
    %p65 = scmp.ne.s32.totalorder %s54, %s55
    %p66 = scmp.eq.s32.totalorder %s20, 0
    %p67 = por %p65, %p66
    %p68 = scmp.ne.s32.totalorder %s54, %s55
    %p69 = scmp.eq.s32.totalorder %s21, 1
    %p70 = por %p68, %p69
    %p72 = scmp.ne.s32.totalorder %s55, %s71
    %p73 = scmp.eq.s32.totalorder %s21, 0
    %p74 = por %p72, %p73
    %s75 = ssub.s32 %s15, %s22
    %p76 = scmp.eq.s32.totalorder %s75, 0
    %s78 = sadd.s32 %s77, 1
    %s79 = scalar_select %p76, %s77, %s78
    %p82 = pneg %p76
    %p83 = scmp.eq.s32.totalorder %s15, 1
    %p84 = por %p82, %p83
    %p85 = scmp.ne.s32.totalorder %s77, %s80
    %p86 = scmp.eq.s32.totalorder %s15, 0
    %p87 = por %p85, %p86
    %p88 = scmp.ne.s32.totalorder %s77, %s80
    %p89 = scmp.eq.s32.totalorder %s20, 1
    %p90 = por %p88, %p89
    %p91 = scmp.ne.s32.totalorder %s80, %s81
    %p92 = scmp.eq.s32.totalorder %s20, 0
    %p93 = por %p91, %p92
    %p94 = scmp.ne.s32.totalorder %s80, %s81
    %p95 = scmp.eq.s32.totalorder %s21, 1
    %p96 = por %p94, %p95
    %p98 = scmp.ne.s32.totalorder %s81, %s97
    %p99 = scmp.eq.s32.totalorder %s21, 0
    %p100 = por %p98, %p99
    %s102 = sadd.s32 %s101, 1
    %p105 = scmp.eq.s32.totalorder %s15, 1
    %p106 = scmp.ne.s32.totalorder %s101, %s103
    %p107 = scmp.eq.s32.totalorder %s15, 0
    %p108 = por %p106, %p107
    %p109 = scmp.ne.s32.totalorder %s101, %s103
    %p110 = scmp.eq.s32.totalorder %s20, 1
    %p111 = por %p109, %p110
    %p112 = scmp.ne.s32.totalorder %s103, %s104
    %p113 = scmp.eq.s32.totalorder %s20, 0
    %p114 = por %p112, %p113
    %p115 = scmp.ne.s32.totalorder %s103, %s104
    %p116 = scmp.eq.s32.totalorder %s21, 1
    %p117 = por %p115, %p116
    %p119 = scmp.ne.s32.totalorder %s104, %s118
    %p120 = scmp.eq.s32.totalorder %s21, 0
    %p121 = por %p119, %p120
    %s123 = sadd.s32 %s122, 1
    %p126 = scmp.eq.s32.totalorder %s15, 1
    %p127 = scmp.ne.s32.totalorder %s122, %s124
    %p128 = scmp.eq.s32.totalorder %s15, 0
    %p129 = por %p127, %p128
    %p130 = scmp.ne.s32.totalorder %s122, %s124
    %p131 = scmp.eq.s32.totalorder %s20, 1
    %p132 = por %p130, %p131
    %p133 = scmp.ne.s32.totalorder %s124, %s125
    %p134 = scmp.eq.s32.totalorder %s20, 0
    %p135 = por %p133, %p134
    %p136 = scmp.ne.s32.totalorder %s124, %s125
    %p137 = scmp.eq.s32.totalorder %s21, 1
    %p138 = por %p136, %p137
    %p140 = scmp.ne.s32.totalorder %s125, %s139
    %p141 = scmp.eq.s32.totalorder %s21, 0
    %p142 = por %p140, %p141
    %s144 = sadd.s32 %s143, 1
    %p147 = scmp.eq.s32.totalorder %s15, 1
    %p148 = scmp.ne.s32.totalorder %s143, %s145
    %p149 = scmp.eq.s32.totalorder %s15, 0
    %p150 = por %p148, %p149
    %p151 = scmp.ne.s32.totalorder %s143, %s145
    %p152 = scmp.eq.s32.totalorder %s20, 1
    %p153 = por %p151, %p152
    %p154 = scmp.ne.s32.totalorder %s145, %s146
    %p155 = scmp.eq.s32.totalorder %s20, 0
    %p156 = por %p154, %p155
    %p157 = scmp.ne.s32.totalorder %s145, %s146
    %p158 = scmp.eq.s32.totalorder %s21, 1
    %p159 = por %p157, %p158
    %p161 = scmp.ne.s32.totalorder %s146, %s160
    %p162 = scmp.eq.s32.totalorder %s21, 0
    %p163 = por %p161, %p162
    %s165 = sadd.s32 %s164, 1
    %p168 = scmp.eq.s32.totalorder %s15, 1
    %p169 = scmp.ne.s32.totalorder %s164, %s166
    %p170 = scmp.eq.s32.totalorder %s15, 0
    %p171 = por %p169, %p170
    %p172 = scmp.ne.s32.totalorder %s164, %s166
    %p173 = scmp.eq.s32.totalorder %s20, 1
    %p174 = por %p172, %p173
    %p175 = scmp.ne.s32.totalorder %s166, %s167
    %p176 = scmp.eq.s32.totalorder %s20, 0
    %p177 = por %p175, %p176
    %p178 = scmp.ne.s32.totalorder %s166, %s167
    %p179 = scmp.eq.s32.totalorder %s21, 1
    %p180 = por %p178, %p179
    %p182 = scmp.ne.s32.totalorder %s167, %s181
    %p183 = scmp.eq.s32.totalorder %s21, 0
    %p184 = por %p182, %p183
    %s186 = sadd.s32 %s185, 1
    %p189 = scmp.eq.s32.totalorder %s15, 1
    %p190 = scmp.ne.s32.totalorder %s185, %s187
    %p191 = scmp.eq.s32.totalorder %s15, 0
    %p192 = por %p190, %p191
    %p193 = scmp.ne.s32.totalorder %s185, %s187
    %p194 = scmp.eq.s32.totalorder %s20, 1
    %p195 = por %p193, %p194
    %p196 = scmp.ne.s32.totalorder %s187, %s188
    %p197 = scmp.eq.s32.totalorder %s20, 0
    %p198 = por %p196, %p197
    %p199 = scmp.ne.s32.totalorder %s187, %s188
    %p200 = scmp.eq.s32.totalorder %s21, 1
    %p201 = por %p199, %p200
    %p203 = scmp.ne.s32.totalorder %s188, %s202
    %p204 = scmp.eq.s32.totalorder %s21, 0
    %p205 = por %p203, %p204
    %s207 = sadd.s32 %s206, 1
    %p210 = scmp.eq.s32.totalorder %s15, 1
    %p211 = scmp.ne.s32.totalorder %s206, %s208
    %p212 = scmp.eq.s32.totalorder %s15, 0
    %p213 = por %p211, %p212
    %p214 = scmp.ne.s32.totalorder %s206, %s208
    %p215 = scmp.eq.s32.totalorder %s20, 1
    %p216 = por %p214, %p215
    %p217 = scmp.ne.s32.totalorder %s208, %s209
    %p218 = scmp.eq.s32.totalorder %s20, 0
    %p219 = por %p217, %p218
    %p220 = scmp.ne.s32.totalorder %s208, %s209
    %p221 = scmp.eq.s32.totalorder %s21, 1
    %p222 = por %p220, %p221
    %p224 = scmp.ne.s32.totalorder %s209, %s223
    %p225 = scmp.eq.s32.totalorder %s21, 0
    %p226 = por %p224, %p225
    %s227 = ssub.s32 %s15, %s22
    %p228 = scmp.eq.s32.totalorder %s227, 0
    %s230 = sadd.s32 %s229, 1
    %s231 = scalar_select %p228, %s229, %s230
    %p234 = pneg %p228
    %p235 = scmp.eq.s32.totalorder %s15, 1
    %p236 = por %p234, %p235
    %p237 = scmp.ne.s32.totalorder %s229, %s232
    %p238 = scmp.eq.s32.totalorder %s15, 0
    %p239 = por %p237, %p238
    %p240 = scmp.ne.s32.totalorder %s229, %s232
    %p241 = scmp.eq.s32.totalorder %s20, 1
    %p242 = por %p240, %p241
    %p243 = scmp.ne.s32.totalorder %s232, %s233
    %p244 = scmp.eq.s32.totalorder %s20, 0
    %p245 = por %p243, %p244
    %p246 = scmp.ne.s32.totalorder %s232, %s233
    %p247 = scmp.eq.s32.totalorder %s21, 1
    %p248 = por %p246, %p247
    %p250 = scmp.ne.s32.totalorder %s233, %s249
    %p251 = scmp.eq.s32.totalorder %s21, 0
    %p252 = por %p250, %p251
    %p253 = scmp.le.s32.totalorder 1, %s15
    %p254 = scmp.lt.s32.totalorder %s15, 3
    %p255 = pnand %p253, %p254
    %p256 = pneg %p255
    // Predicated region
    $region9: #{cabasc_forward.1} parent=5 // pred_check
      _
    $region10: #{cabasc_forward.1} parent=5 // pred_check_branch
      %258 = sbr.rel (%p255) target = $region12
    $region11: #{cabasc_forward.1} parent=5 // pred_region
      %s259 = ssub.s32 %s15, 1
      // Predicated region
      $region13: #{cabasc_forward.1} parent=11 // pred_check
        %p260 = pneg %p114
      $region14: #{cabasc_forward.1} parent=11 // pred_check_branch
        %262 = sbr.rel (%p260) target = $region16
      $region15: #{cabasc_forward.1} parent=11 // pred_region
        _
      $region16: #{cabasc_forward.1} parent=11 // pred_fallthru
        _
      // Predicated region
      $region17: #{cabasc_forward.1} parent=11 // pred_check
        %p263 = pneg %p135
      $region18: #{cabasc_forward.1} parent=11 // pred_check_branch
        %265 = sbr.rel (%p263) target = $region20
      $region19: #{cabasc_forward.1} parent=11 // pred_region
        _
      $region20: #{cabasc_forward.1} parent=11 // pred_fallthru
        _
      // Predicated region
      $region21: #{cabasc_forward.1} parent=11 // pred_check
        %p266 = pneg %p156
      $region22: #{cabasc_forward.1} parent=11 // pred_check_branch
        %268 = sbr.rel (%p266) target = $region24
      $region23: #{cabasc_forward.1} parent=11 // pred_region
        _
      $region24: #{cabasc_forward.1} parent=11 // pred_fallthru
        _
      // Predicated region
      $region25: #{cabasc_forward.1} parent=11 // pred_check
        %p269 = pneg %p177
      $region26: #{cabasc_forward.1} parent=11 // pred_check_branch
        %271 = sbr.rel (%p269) target = $region28
      $region27: #{cabasc_forward.1} parent=11 // pred_region
        _
      $region28: #{cabasc_forward.1} parent=11 // pred_fallthru
        _
      // Predicated region
      $region29: #{cabasc_forward.1} parent=11 // pred_check
        %p272 = pneg %p198
      $region30: #{cabasc_forward.1} parent=11 // pred_check_branch
        %274 = sbr.rel (%p272) target = $region32
      $region31: #{cabasc_forward.1} parent=11 // pred_region
        _
      $region32: #{cabasc_forward.1} parent=11 // pred_fallthru
        _
      // Predicated region
      $region33: #{cabasc_forward.1} parent=11 // pred_check
        %p275 = pneg %p219
      $region34: #{cabasc_forward.1} parent=11 // pred_check_branch
        %277 = sbr.rel (%p275) target = $region36
      $region35: #{cabasc_forward.1} parent=11 // pred_region
        _
      $region36: #{cabasc_forward.1} parent=11 // pred_fallthru
        _
    $region12: #{cabasc_forward.1} parent=5 // pred_fallthru
      _
    %p278 = scmp.lt.s32.totalorder %s15, 2
    // Predicated region
    $region37: #{cabasc_forward.1} parent=5 // pred_check
      %p279 = pneg %p278
    $region38: #{cabasc_forward.1} parent=5 // pred_check_branch
      %281 = sbr.rel (%p279) target = $region40
    $region39: #{cabasc_forward.1} parent=5 // pred_region
      // Predicated region
      $region41: #{cabasc_forward.1} parent=39 // pred_check
        %p282 = pneg %p35
      $region42: #{cabasc_forward.1} parent=39 // pred_check_branch
        %284 = sbr.rel (%p282) target = $region44
      $region43: #{cabasc_forward.1} parent=39 // pred_region
        %s285 = smul.u32 8, %s15
        %p286 = scmp.lt.s32.totalorder %s285, 15
        %s287 = scalar_select %p286, %s285, 15
        %s288 = smul.addr %s287, 2
        %s289 = smul.addr %s288, 4
        %s290 = scalar_lea.vmem %s0, %s289
        %s291 = smul.u32 8, %s15
      $region44: #{cabasc_forward.1} parent=39 // pred_fallthru
        _
      // Predicated region
      $region45: #{cabasc_forward.1} parent=39 // pred_check
        %p292 = pneg %p61
      $region46: #{cabasc_forward.1} parent=39 // pred_check_branch
        %294 = sbr.rel (%p292) target = $region48
      $region47: #{cabasc_forward.1} parent=39 // pred_region
        %p295 = scmp.lt.s32.totalorder %s15, 1
        %s296 = scalar_select %p295, %s15, 1
        %s297 = smul.addr %s296, 8
        %s298 = scalar_lea.vmem %s1, %s297
      $region48: #{cabasc_forward.1} parent=39 // pred_fallthru
        _
      // Predicated region
      $region49: #{cabasc_forward.1} parent=39 // pred_check
        %p299 = pneg %p87
      $region50: #{cabasc_forward.1} parent=39 // pred_check_branch
        %301 = sbr.rel (%p299) target = $region52
      $region51: #{cabasc_forward.1} parent=39 // pred_region
        %p302 = scmp.lt.s32.totalorder %s15, 1
        %s303 = scalar_select %p302, %s15, 1
        %s304 = smul.addr %s303, 8
        %s305 = scalar_lea.vmem %s2, %s304
      $region52: #{cabasc_forward.1} parent=39 // pred_fallthru
        _
    $region40: #{cabasc_forward.1} parent=5 // pred_fallthru
      _
    %p306 = scmp.le.s32.totalorder 1, %s15
    %p307 = scmp.lt.s32.totalorder %s15, 3
    %p308 = pnand %p306, %p307
    %p309 = pneg %p308
    // Predicated region
    $region53: #{cabasc_forward.1} parent=5 // pred_check
      _
    $region54: #{cabasc_forward.1} parent=5 // pred_check_branch
      %311 = sbr.rel (%p308) target = $region56
    $region55: #{cabasc_forward.1} parent=5 // pred_region
      %s312 = ssub.s32 %s15, 1
      %s313 = smul.u32 8, %s20
      %p314 = scmp.lt.s32.totalorder %s313, 15
      %s315 = scalar_select %p314, %s313, 15
      %s316 = smul.addr %s315, 2
      %s317 = smul.addr %s316, 4
      %s318 = scalar_lea.vmem %s0, %s317
      %p319 = pneg %p41
      %p320 = pneg %p38
      %p321 = scmp.lt.s32.totalorder %s20, 1
      %s322 = scalar_select %p321, %s20, 1
      %s323 = smul.addr %s322, 8
      %s324 = scalar_lea.vmem %s1, %s323
      %p325 = pneg %p67
      %p326 = pneg %p64
      %p327 = scmp.lt.s32.totalorder %s20, 1
      %s328 = scalar_select %p327, %s20, 1
      %s329 = smul.addr %s328, 8
      %s330 = scalar_lea.vmem %s2, %s329
      %p331 = pneg %p93
      %p332 = pneg %p90
      %p333 = pneg %p114
      %p334 = pneg %p111
      %p335 = pneg %p135
      %p336 = pneg %p132
      %p337 = pneg %p156
      %p338 = pneg %p153
      %p339 = pneg %p177
      %p340 = pneg %p174
      %p341 = pneg %p198
      %p342 = pneg %p195
      %p343 = pneg %p219
      %p344 = pneg %p216
      %p345 = pneg %p245
      %p346 = pneg %p242
      %p347 = scmp.lt.s32.totalorder %s20, 1
      %s348 = scalar_select %p347, %s20, 1
      %s349 = smul.addr %s348, 8
      %s350 = scalar_lea.vmem %s9, %s349
      %s351 = smul.u32 8, %s20
      %p352 = scmp.lt.s32.totalorder %s351, 15
      %s353 = scalar_select %p352, %s351, 15
      %s354 = smul.addr %s353, 2
      %s355 = smul.addr %s354, 4
      %s356 = scalar_lea.vmem %s0, %s355
      %s357 = smul.u32 8, %s20
      %p358 = scmp.lt.s32.totalorder %s20, 1
      %s359 = scalar_select %p358, %s20, 1
      %s360 = smul.addr %s359, 8
      %s361 = scalar_lea.vmem %s1, %s360
      %p362 = scmp.lt.s32.totalorder %s20, 1
      %s363 = scalar_select %p362, %s20, 1
      %s364 = smul.addr %s363, 8
      %s365 = scalar_lea.vmem %s2, %s364
      %p366 = scmp.lt.s32.totalorder %s20, 1
      %s367 = scalar_select %p366, %s20, 1
      %s368 = smul.addr %s367, 8
      %s369 = scalar_lea.vmem %s9, %s368
      %v370 = vld [vmem:[%s356] sm:$0xf]
      %v371 = vld [vmem:[%s356 + $0x4] sm:$0xf]
      %v372 = vld [vmem:[%s356 + $0x8] sm:$0xf]
      %v373 = vld [vmem:[%s356 + $0xc] sm:$0xf]
      %v374 = vld [vmem:[%s356 + $0x10] sm:$0xf]
      %v375 = vld [vmem:[%s356 + $0x14] sm:$0xf]
      %v376 = vld [vmem:[%s356 + $0x18] sm:$0xf]
      %v377 = vld [vmem:[%s356 + $0x1c] sm:$0xf]
      %v378 = vld [vmem:[%s356 + $0x20] sm:$0xf]
      %v379 = vld [vmem:[%s356 + $0x24] sm:$0xf]
      %v380 = vld [vmem:[%s356 + $0x28] sm:$0xf]
      %v381 = vld [vmem:[%s356 + $0x2c] sm:$0xf]
      %v382 = vld [vmem:[%s356 + $0x30] sm:$0xf]
      %v383 = vld [vmem:[%s356 + $0x34] sm:$0xf]
      %v384 = vld [vmem:[%s356 + $0x38] sm:$0xf]
      %v385 = vld [vmem:[%s356 + $0x3c] sm:$0xf]
      %v386 = vld [vmem:[%s4] sm:$0x1]
      %v388 = vpack.i.b16 %v386, %v386
      %v390 = vlaneseq
      %v391 = vshrl.u32 %v390, 7
      %v392 = vsub.s32 0, %v391
      %v393 = vrot.slane %v388, %v392
      %v395 = vunpack.c.l.b16 %v393
      %v396 = vpack.c.b16 %v395, %v395
      %v398 = vmul.bf16 %v370, %v396
      %v399 = vmul.bf16 %v371, %v396
      %v400 = vmul.bf16 %v372, %v396
      %v401 = vmul.bf16 %v373, %v396
      %v402 = vmul.bf16 %v374, %v396
      %v403 = vmul.bf16 %v375, %v396
      %v404 = vmul.bf16 %v376, %v396
      %v405 = vmul.bf16 %v377, %v396
      %v406 = vmul.bf16 %v378, %v396
      %v407 = vmul.bf16 %v379, %v396
      %v408 = vmul.bf16 %v380, %v396
      %v409 = vmul.bf16 %v381, %v396
      %v410 = vmul.bf16 %v382, %v396
      %v411 = vmul.bf16 %v383, %v396
      %v412 = vmul.bf16 %v384, %v396
      %v413 = vmul.bf16 %v385, %v396
      %v414 = vunpack.c.l.bf16 %v398
      %v415 = vunpack.c.l.bf16 %v399
      %v416 = vunpack.c.l.bf16 %v400
      %v417 = vunpack.c.l.bf16 %v401
      %v418 = vunpack.c.l.bf16 %v402
      %v419 = vunpack.c.l.bf16 %v403
      %v420 = vunpack.c.l.bf16 %v404
      %v421 = vunpack.c.l.bf16 %v405
      %v422 = vunpack.c.l.bf16 %v406
      %v423 = vunpack.c.l.bf16 %v407
      %v424 = vunpack.c.l.bf16 %v408
      %v425 = vunpack.c.l.bf16 %v409
      %v426 = vunpack.c.l.bf16 %v410
      %v427 = vunpack.c.l.bf16 %v411
      %v428 = vunpack.c.l.bf16 %v412
      %v429 = vunpack.c.l.bf16 %v413
      %430 = vadd.xlane.f32.xlu0 %v414
      %v431 = vpop.xlane.xlu0 %430
      %432 = vadd.xlane.f32.xlu0 %v415
      %v433 = vpop.xlane.xlu0 %432
      %434 = vadd.xlane.f32.xlu0 %v416
      %v435 = vpop.xlane.xlu0 %434
      %436 = vadd.xlane.f32.xlu0 %v417
      %v437 = vpop.xlane.xlu0 %436
      %438 = vadd.xlane.f32.xlu0 %v418
      %v439 = vpop.xlane.xlu0 %438
      %440 = vadd.xlane.f32.xlu0 %v419
      %v441 = vpop.xlane.xlu0 %440
      %442 = vadd.xlane.f32.xlu0 %v420
      %v443 = vpop.xlane.xlu0 %442
      %444 = vadd.xlane.f32.xlu0 %v421
      %v445 = vpop.xlane.xlu0 %444
      %446 = vadd.xlane.f32.xlu0 %v422
      %v447 = vpop.xlane.xlu0 %446
      %448 = vadd.xlane.f32.xlu0 %v423
      %v449 = vpop.xlane.xlu0 %448
      %450 = vadd.xlane.f32.xlu0 %v424
      %v451 = vpop.xlane.xlu0 %450
      %452 = vadd.xlane.f32.xlu0 %v425
      %v453 = vpop.xlane.xlu0 %452
      %454 = vadd.xlane.f32.xlu0 %v426
      %v455 = vpop.xlane.xlu0 %454
      %456 = vadd.xlane.f32.xlu0 %v427
      %v457 = vpop.xlane.xlu0 %456
      %458 = vadd.xlane.f32.xlu0 %v428
      %v459 = vpop.xlane.xlu0 %458
      %460 = vadd.xlane.f32.xlu0 %v429
      %v461 = vpop.xlane.xlu0 %460
      %v462 = vpack.c.bf16 %v433, %v431
      %v463 = vpack.c.bf16 %v437, %v435
      %v464 = vpack.c.bf16 %v441, %v439
      %v465 = vpack.c.bf16 %v445, %v443
      %v466 = vpack.c.bf16 %v449, %v447
      %v467 = vpack.c.bf16 %v453, %v451
      %v468 = vpack.c.bf16 %v457, %v455
      %v469 = vpack.c.bf16 %v461, %v459
      %v470 = vunpack.c.l.bf16 %v462
      %v471 = vunpack.c.h.bf16 %v462
      %v472 = vunpack.c.l.bf16 %v463
      %v473 = vunpack.c.h.bf16 %v463
      %v474 = vunpack.c.l.bf16 %v464
      %v475 = vunpack.c.h.bf16 %v464
      %v476 = vunpack.c.l.bf16 %v465
      %v477 = vunpack.c.h.bf16 %v465
      %v478 = vunpack.c.l.bf16 %v466
      %v479 = vunpack.c.h.bf16 %v466
      %v480 = vunpack.c.l.bf16 %v467
      %v481 = vunpack.c.h.bf16 %v467
      %v482 = vunpack.c.l.bf16 %v468
      %v483 = vunpack.c.h.bf16 %v468
      %v484 = vunpack.c.l.bf16 %v469
      %v485 = vunpack.c.h.bf16 %v469
      %v486 = vld [vmem:[%s361] sm:$0xff]
      %488 = vset.pattern.permute.xlu0 0
      %489 = vperm.xlu0 %488, %v486
      %v490 = vpop.permute.xlu0 %489
      %v491 = vlaneseq
      %v492 = vshrl.u32 %v491, 7
      %v493 = vsub.s32 0, %v492
      %v494 = vrot.slane %v490, %v493
      %v495 = vlaneseq
      %v496 = vshrl.u32 %v495, 7
      %v497 = vsub.s32 1, %v496
      %v498 = vrot.slane %v490, %v497
      %v499 = vlaneseq
      %v500 = vshrl.u32 %v499, 7
      %v501 = vsub.s32 2, %v500
      %v502 = vrot.slane %v490, %v501
      %v503 = vlaneseq
      %v504 = vshrl.u32 %v503, 7
      %v505 = vsub.s32 3, %v504
      %v506 = vrot.slane %v490, %v505
      %v507 = vlaneseq
      %v508 = vshrl.u32 %v507, 7
      %v509 = vsub.s32 4, %v508
      %v510 = vrot.slane %v490, %v509
      %v511 = vlaneseq
      %v512 = vshrl.u32 %v511, 7
      %v513 = vsub.s32 5, %v512
      %v514 = vrot.slane %v490, %v513
      %v515 = vlaneseq
      %v516 = vshrl.u32 %v515, 7
      %v517 = vsub.s32 6, %v516
      %v518 = vrot.slane %v490, %v517
      %v519 = vlaneseq
      %v520 = vshrl.u32 %v519, 7
      %v521 = vsub.s32 7, %v520
      %v522 = vrot.slane %v490, %v521
      %v531 = vadd.f32 %v470, %v494
      %v532 = vadd.f32 %v471, %v494
      %v533 = vadd.f32 %v472, %v498
      %v534 = vadd.f32 %v473, %v498
      %v535 = vadd.f32 %v474, %v502
      %v536 = vadd.f32 %v475, %v502
      %v537 = vadd.f32 %v476, %v506
      %v538 = vadd.f32 %v477, %v506
      %v539 = vadd.f32 %v478, %v510
      %v540 = vadd.f32 %v479, %v510
      %v541 = vadd.f32 %v480, %v514
      %v542 = vadd.f32 %v481, %v514
      %v543 = vadd.f32 %v482, %v518
      %v544 = vadd.f32 %v483, %v518
      %v545 = vadd.f32 %v484, %v522
      %v546 = vadd.f32 %v485, %v522
      %v547 = vtanh.pop %v531
      %v548 = vtanh.pop %v532
      %v549 = vtanh.pop %v533
      %v550 = vtanh.pop %v534
      %v551 = vtanh.pop %v535
      %v552 = vtanh.pop %v536
      %v553 = vtanh.pop %v537
      %v554 = vtanh.pop %v538
      %v555 = vtanh.pop %v539
      %v556 = vtanh.pop %v540
      %v557 = vtanh.pop %v541
      %v558 = vtanh.pop %v542
      %v559 = vtanh.pop %v543
      %v560 = vtanh.pop %v544
      %v561 = vtanh.pop %v545
      %v562 = vtanh.pop %v546
      %v563 = vld [vmem:[%s3] sm:$0x1]
      %v565 = vlaneseq
      %v566 = vshrl.u32 %v565, 7
      %v567 = vsub.s32 0, %v566
      %v568 = vrot.slane %v563, %v567
      %570 = vbcast.lane.b32.xlu0 %v568, 256
      %v571 = vpop.permute.xlu0 %570
      %s573 = sor.u32 256, 8
      %574 = vbcast.lane.b32.xlu0 %v568, %s573
      %v575 = vpop.permute.xlu0 %574
      %v578 = vadd.f32 %v547, %v571
      %v579 = vadd.f32 %v548, %v575
      %v580 = vadd.f32 %v549, %v571
      %v581 = vadd.f32 %v550, %v575
      %v582 = vadd.f32 %v551, %v571
      %v583 = vadd.f32 %v552, %v575
      %v584 = vadd.f32 %v553, %v571
      %v585 = vadd.f32 %v554, %v575
      %v586 = vadd.f32 %v555, %v571
      %v587 = vadd.f32 %v556, %v575
      %v588 = vadd.f32 %v557, %v571
      %v589 = vadd.f32 %v558, %v575
      %v590 = vadd.f32 %v559, %v571
      %v591 = vadd.f32 %v560, %v575
      %v592 = vadd.f32 %v561, %v571
      %v593 = vadd.f32 %v562, %v575
      %610 = vset.pattern.permute.xlu0 0
      %611 = vperm.xlu0 %610, %v578
      %v612 = vpop.permute.xlu0 %611
      %613 = vset.pattern.permute.xlu0 0
      %614 = vperm.xlu0 %613, %v579
      %v615 = vpop.permute.xlu0 %614
      %616 = vset.pattern.permute.xlu0 0
      %617 = vperm.xlu0 %616, %v580
      %v618 = vpop.permute.xlu0 %617
      %619 = vset.pattern.permute.xlu0 0
      %620 = vperm.xlu0 %619, %v581
      %v621 = vpop.permute.xlu0 %620
      %622 = vset.pattern.permute.xlu0 0
      %623 = vperm.xlu0 %622, %v582
      %v624 = vpop.permute.xlu0 %623
      %625 = vset.pattern.permute.xlu0 0
      %626 = vperm.xlu0 %625, %v583
      %v627 = vpop.permute.xlu0 %626
      %628 = vset.pattern.permute.xlu0 0
      %629 = vperm.xlu0 %628, %v584
      %v630 = vpop.permute.xlu0 %629
      %631 = vset.pattern.permute.xlu0 0
      %632 = vperm.xlu0 %631, %v585
      %v633 = vpop.permute.xlu0 %632
      %634 = vset.pattern.permute.xlu0 0
      %635 = vperm.xlu0 %634, %v586
      %v636 = vpop.permute.xlu0 %635
      %637 = vset.pattern.permute.xlu0 0
      %638 = vperm.xlu0 %637, %v587
      %v639 = vpop.permute.xlu0 %638
      %640 = vset.pattern.permute.xlu0 0
      %641 = vperm.xlu0 %640, %v588
      %v642 = vpop.permute.xlu0 %641
      %643 = vset.pattern.permute.xlu0 0
      %644 = vperm.xlu0 %643, %v589
      %v645 = vpop.permute.xlu0 %644
      %646 = vset.pattern.permute.xlu0 0
      %647 = vperm.xlu0 %646, %v590
      %v648 = vpop.permute.xlu0 %647
      %649 = vset.pattern.permute.xlu0 0
      %650 = vperm.xlu0 %649, %v591
      %v651 = vpop.permute.xlu0 %650
      %652 = vset.pattern.permute.xlu0 0
      %653 = vperm.xlu0 %652, %v592
      %v654 = vpop.permute.xlu0 %653
      %655 = vset.pattern.permute.xlu0 0
      %656 = vperm.xlu0 %655, %v593
      %v657 = vpop.permute.xlu0 %656
      %v658 = vlaneseq
      %v659 = vand.u32 %v658, 127
      %v660 = vlaneseq
      %v661 = vshrl.u32 %v660, 7
      %v662 = vsub.s32 %v659, %v661
      %v663 = vrot.slane %v612, %v662
      %v664 = vadd.s32 %v659, 4294967288
      %v665 = vlaneseq
      %v666 = vshrl.u32 %v665, 7
      %v667 = vsub.s32 %v664, %v666
      %v668 = vrot.slane %v615, %v667
      %vm669 = vcmask 130112
      %v670 = vsel %vm669, %v668, %v663
      %v671 = vlaneseq
      %v672 = vshrl.u32 %v671, 7
      %v673 = vsub.s32 %v659, %v672
      %v674 = vrot.slane %v618, %v673
      %v675 = vlaneseq
      %v676 = vshrl.u32 %v675, 7
      %v677 = vsub.s32 %v664, %v676
      %v678 = vrot.slane %v621, %v677
      %v679 = vsel %vm669, %v678, %v674
      %v680 = vlaneseq
      %v681 = vshrl.u32 %v680, 7
      %v682 = vsub.s32 %v659, %v681
      %v683 = vrot.slane %v624, %v682
      %v684 = vlaneseq
      %v685 = vshrl.u32 %v684, 7
      %v686 = vsub.s32 %v664, %v685
      %v687 = vrot.slane %v627, %v686
      %v688 = vsel %vm669, %v687, %v683
      %v689 = vlaneseq
      %v690 = vshrl.u32 %v689, 7
      %v691 = vsub.s32 %v659, %v690
      %v692 = vrot.slane %v630, %v691
      %v693 = vlaneseq
      %v694 = vshrl.u32 %v693, 7
      %v695 = vsub.s32 %v664, %v694
      %v696 = vrot.slane %v633, %v695
      %v697 = vsel %vm669, %v696, %v692
      %v698 = vlaneseq
      %v699 = vshrl.u32 %v698, 7
      %v700 = vsub.s32 %v659, %v699
      %v701 = vrot.slane %v636, %v700
      %v702 = vlaneseq
      %v703 = vshrl.u32 %v702, 7
      %v704 = vsub.s32 %v664, %v703
      %v705 = vrot.slane %v639, %v704
      %v706 = vsel %vm669, %v705, %v701
      %v707 = vlaneseq
      %v708 = vshrl.u32 %v707, 7
      %v709 = vsub.s32 %v659, %v708
      %v710 = vrot.slane %v642, %v709
      %v711 = vlaneseq
      %v712 = vshrl.u32 %v711, 7
      %v713 = vsub.s32 %v664, %v712
      %v714 = vrot.slane %v645, %v713
      %v715 = vsel %vm669, %v714, %v710
      %v716 = vlaneseq
      %v717 = vshrl.u32 %v716, 7
      %v718 = vsub.s32 %v659, %v717
      %v719 = vrot.slane %v648, %v718
      %v720 = vlaneseq
      %v721 = vshrl.u32 %v720, 7
      %v722 = vsub.s32 %v664, %v721
      %v723 = vrot.slane %v651, %v722
      %v724 = vsel %vm669, %v723, %v719
      %v725 = vlaneseq
      %v726 = vshrl.u32 %v725, 7
      %v727 = vsub.s32 %v659, %v726
      %v728 = vrot.slane %v654, %v727
      %v729 = vlaneseq
      %v730 = vshrl.u32 %v729, 7
      %v731 = vsub.s32 %v664, %v730
      %v732 = vrot.slane %v657, %v731
      %v733 = vsel %vm669, %v732, %v728
      %vm734 = vcmask 1041409
      %v735 = vsel %vm734, %v679, %v670
      %vm736 = vcmask 1042434
      %v737 = vsel %vm736, %v688, %v735
      %vm738 = vcmask 1043459
      %v739 = vsel %vm738, %v697, %v737
      %vm740 = vcmask 1044484
      %v741 = vsel %vm740, %v706, %v739
      %vm742 = vcmask 1045509
      %v743 = vsel %vm742, %v715, %v741
      %vm744 = vcmask 1046534
      %v745 = vsel %vm744, %v724, %v743
      %vm746 = vcmask 1047559
      %v747 = vsel %vm746, %v733, %v745
      %vm749 = vcmask 130048
      %v750 = vsel %vm749, %v747, -inf
      %751 = vmax.xlane.f32.xlu0 %v750
      %v752 = vpop.xlane.xlu0 %751
      %v754 = vlaneseq
      %v755 = vshrl.u32 %v754, 7
      %v756 = vsub.s32 0, %v755
      %v757 = vrot.slane %v752, %v756
      %v758 = vlaneseq
      %v759 = vshrl.u32 %v758, 7
      %v760 = vsub.s32 1, %v759
      %v761 = vrot.slane %v752, %v760
      %v762 = vlaneseq
      %v763 = vshrl.u32 %v762, 7
      %v764 = vsub.s32 2, %v763
      %v765 = vrot.slane %v752, %v764
      %v766 = vlaneseq
      %v767 = vshrl.u32 %v766, 7
      %v768 = vsub.s32 3, %v767
      %v769 = vrot.slane %v752, %v768
      %v770 = vlaneseq
      %v771 = vshrl.u32 %v770, 7
      %v772 = vsub.s32 4, %v771
      %v773 = vrot.slane %v752, %v772
      %v774 = vlaneseq
      %v775 = vshrl.u32 %v774, 7
      %v776 = vsub.s32 5, %v775
      %v777 = vrot.slane %v752, %v776
      %v778 = vlaneseq
      %v779 = vshrl.u32 %v778, 7
      %v780 = vsub.s32 6, %v779
      %v781 = vrot.slane %v752, %v780
      %v782 = vlaneseq
      %v783 = vshrl.u32 %v782, 7
      %v784 = vsub.s32 7, %v783
      %v785 = vrot.slane %v752, %v784
      %v794 = vsub.f32 %v578, %v757
      %v795 = vsub.f32 %v579, %v757
      %v796 = vsub.f32 %v580, %v761
      %v797 = vsub.f32 %v581, %v761
      %v798 = vsub.f32 %v582, %v765
      %v799 = vsub.f32 %v583, %v765
      %v800 = vsub.f32 %v584, %v769
      %v801 = vsub.f32 %v585, %v769
      %v802 = vsub.f32 %v586, %v773
      %v803 = vsub.f32 %v587, %v773
      %v804 = vsub.f32 %v588, %v777
      %v805 = vsub.f32 %v589, %v777
      %v806 = vsub.f32 %v590, %v781
      %v807 = vsub.f32 %v591, %v781
      %v808 = vsub.f32 %v592, %v785
      %v809 = vsub.f32 %v593, %v785
      %v810 = vmul.f32 %v794, 1.442695
      %v811 = vpow.pop %v810
      %v812 = vmul.f32 %v795, 1.442695
      %v813 = vpow.pop %v812
      %v814 = vmul.f32 %v796, 1.442695
      %v815 = vpow.pop %v814
      %v816 = vmul.f32 %v797, 1.442695
      %v817 = vpow.pop %v816
      %v818 = vmul.f32 %v798, 1.442695
      %v819 = vpow.pop %v818
      %v820 = vmul.f32 %v799, 1.442695
      %v821 = vpow.pop %v820
      %v822 = vmul.f32 %v800, 1.442695
      %v823 = vpow.pop %v822
      %v824 = vmul.f32 %v801, 1.442695
      %v825 = vpow.pop %v824
      %v826 = vmul.f32 %v802, 1.442695
      %v827 = vpow.pop %v826
      %v828 = vmul.f32 %v803, 1.442695
      %v829 = vpow.pop %v828
      %v830 = vmul.f32 %v804, 1.442695
      %v831 = vpow.pop %v830
      %v832 = vmul.f32 %v805, 1.442695
      %v833 = vpow.pop %v832
      %v834 = vmul.f32 %v806, 1.442695
      %v835 = vpow.pop %v834
      %v836 = vmul.f32 %v807, 1.442695
      %v837 = vpow.pop %v836
      %v838 = vmul.f32 %v808, 1.442695
      %v839 = vpow.pop %v838
      %v840 = vmul.f32 %v809, 1.442695
      %v841 = vpow.pop %v840
      %858 = vset.pattern.permute.xlu0 0
      %859 = vperm.xlu0 %858, %v811
      %v860 = vpop.permute.xlu0 %859
      %861 = vset.pattern.permute.xlu0 0
      %862 = vperm.xlu0 %861, %v813
      %v863 = vpop.permute.xlu0 %862
      %864 = vset.pattern.permute.xlu0 0
      %865 = vperm.xlu0 %864, %v815
      %v866 = vpop.permute.xlu0 %865
      %867 = vset.pattern.permute.xlu0 0
      %868 = vperm.xlu0 %867, %v817
      %v869 = vpop.permute.xlu0 %868
      %870 = vset.pattern.permute.xlu0 0
      %871 = vperm.xlu0 %870, %v819
      %v872 = vpop.permute.xlu0 %871
      %873 = vset.pattern.permute.xlu0 0
      %874 = vperm.xlu0 %873, %v821
      %v875 = vpop.permute.xlu0 %874
      %876 = vset.pattern.permute.xlu0 0
      %877 = vperm.xlu0 %876, %v823
      %v878 = vpop.permute.xlu0 %877
      %879 = vset.pattern.permute.xlu0 0
      %880 = vperm.xlu0 %879, %v825
      %v881 = vpop.permute.xlu0 %880
      %882 = vset.pattern.permute.xlu0 0
      %883 = vperm.xlu0 %882, %v827
      %v884 = vpop.permute.xlu0 %883
      %885 = vset.pattern.permute.xlu0 0
      %886 = vperm.xlu0 %885, %v829
      %v887 = vpop.permute.xlu0 %886
      %888 = vset.pattern.permute.xlu0 0
      %889 = vperm.xlu0 %888, %v831
      %v890 = vpop.permute.xlu0 %889
      %891 = vset.pattern.permute.xlu0 0
      %892 = vperm.xlu0 %891, %v833
      %v893 = vpop.permute.xlu0 %892
      %894 = vset.pattern.permute.xlu0 0
      %895 = vperm.xlu0 %894, %v835
      %v896 = vpop.permute.xlu0 %895
      %897 = vset.pattern.permute.xlu0 0
      %898 = vperm.xlu0 %897, %v837
      %v899 = vpop.permute.xlu0 %898
      %900 = vset.pattern.permute.xlu0 0
      %901 = vperm.xlu0 %900, %v839
      %v902 = vpop.permute.xlu0 %901
      %903 = vset.pattern.permute.xlu0 0
      %904 = vperm.xlu0 %903, %v841
      %v905 = vpop.permute.xlu0 %904
      %v906 = vlaneseq
      %v907 = vshrl.u32 %v906, 7
      %v908 = vsub.s32 %v659, %v907
      %v909 = vrot.slane %v860, %v908
      %v910 = vlaneseq
      %v911 = vshrl.u32 %v910, 7
      %v912 = vsub.s32 %v664, %v911
      %v913 = vrot.slane %v863, %v912
      %v914 = vsel %vm669, %v913, %v909
      %v915 = vlaneseq
      %v916 = vshrl.u32 %v915, 7
      %v917 = vsub.s32 %v659, %v916
      %v918 = vrot.slane %v866, %v917
      %v919 = vlaneseq
      %v920 = vshrl.u32 %v919, 7
      %v921 = vsub.s32 %v664, %v920
      %v922 = vrot.slane %v869, %v921
      %v923 = vsel %vm669, %v922, %v918
      %v924 = vlaneseq
      %v925 = vshrl.u32 %v924, 7
      %v926 = vsub.s32 %v659, %v925
      %v927 = vrot.slane %v872, %v926
      %v928 = vlaneseq
      %v929 = vshrl.u32 %v928, 7
      %v930 = vsub.s32 %v664, %v929
      %v931 = vrot.slane %v875, %v930
      %v932 = vsel %vm669, %v931, %v927
      %v933 = vlaneseq
      %v934 = vshrl.u32 %v933, 7
      %v935 = vsub.s32 %v659, %v934
      %v936 = vrot.slane %v878, %v935
      %v937 = vlaneseq
      %v938 = vshrl.u32 %v937, 7
      %v939 = vsub.s32 %v664, %v938
      %v940 = vrot.slane %v881, %v939
      %v941 = vsel %vm669, %v940, %v936
      %v942 = vlaneseq
      %v943 = vshrl.u32 %v942, 7
      %v944 = vsub.s32 %v659, %v943
      %v945 = vrot.slane %v884, %v944
      %v946 = vlaneseq
      %v947 = vshrl.u32 %v946, 7
      %v948 = vsub.s32 %v664, %v947
      %v949 = vrot.slane %v887, %v948
      %v950 = vsel %vm669, %v949, %v945
      %v951 = vlaneseq
      %v952 = vshrl.u32 %v951, 7
      %v953 = vsub.s32 %v659, %v952
      %v954 = vrot.slane %v890, %v953
      %v955 = vlaneseq
      %v956 = vshrl.u32 %v955, 7
      %v957 = vsub.s32 %v664, %v956
      %v958 = vrot.slane %v893, %v957
      %v959 = vsel %vm669, %v958, %v954
      %v960 = vlaneseq
      %v961 = vshrl.u32 %v960, 7
      %v962 = vsub.s32 %v659, %v961
      %v963 = vrot.slane %v896, %v962
      %v964 = vlaneseq
      %v965 = vshrl.u32 %v964, 7
      %v966 = vsub.s32 %v664, %v965
      %v967 = vrot.slane %v899, %v966
      %v968 = vsel %vm669, %v967, %v963
      %v969 = vlaneseq
      %v970 = vshrl.u32 %v969, 7
      %v971 = vsub.s32 %v659, %v970
      %v972 = vrot.slane %v902, %v971
      %v973 = vlaneseq
      %v974 = vshrl.u32 %v973, 7
      %v975 = vsub.s32 %v664, %v974
      %v976 = vrot.slane %v905, %v975
      %v977 = vsel %vm669, %v976, %v972
      %v978 = vsel %vm734, %v923, %v914
      %v979 = vsel %vm736, %v932, %v978
      %v980 = vsel %vm738, %v941, %v979
      %v981 = vsel %vm740, %v950, %v980
      %v982 = vsel %vm742, %v959, %v981
      %v983 = vsel %vm744, %v968, %v982
      %v984 = vsel %vm746, %v977, %v983
      %v986 = vsel %vm749, %v984, 0.0
      %987 = vadd.xlane.f32.xlu0 %v986
      %v988 = vpop.xlane.xlu0 %987
      %v989 = vrcp.pop %v988
      %v991 = vlaneseq
      %v992 = vshrl.u32 %v991, 7
      %v993 = vsub.s32 0, %v992
      %v994 = vrot.slane %v989, %v993
      %v995 = vlaneseq
      %v996 = vshrl.u32 %v995, 7
      %v997 = vsub.s32 1, %v996
      %v998 = vrot.slane %v989, %v997
      %v999 = vlaneseq
      %v1000 = vshrl.u32 %v999, 7
      %v1001 = vsub.s32 2, %v1000
      %v1002 = vrot.slane %v989, %v1001
      %v1003 = vlaneseq
      %v1004 = vshrl.u32 %v1003, 7
      %v1005 = vsub.s32 3, %v1004
      %v1006 = vrot.slane %v989, %v1005
      %v1007 = vlaneseq
      %v1008 = vshrl.u32 %v1007, 7
      %v1009 = vsub.s32 4, %v1008
      %v1010 = vrot.slane %v989, %v1009
      %v1011 = vlaneseq
      %v1012 = vshrl.u32 %v1011, 7
      %v1013 = vsub.s32 5, %v1012
      %v1014 = vrot.slane %v989, %v1013
      %v1015 = vlaneseq
      %v1016 = vshrl.u32 %v1015, 7
      %v1017 = vsub.s32 6, %v1016
      %v1018 = vrot.slane %v989, %v1017
      %v1019 = vlaneseq
      %v1020 = vshrl.u32 %v1019, 7
      %v1021 = vsub.s32 7, %v1020
      %v1022 = vrot.slane %v989, %v1021
      %v1031 = vmul.f32 %v811, %v994
      %v1032 = vmul.f32 %v813, %v994
      %v1033 = vmul.f32 %v815, %v998
      %v1034 = vmul.f32 %v817, %v998
      %v1035 = vmul.f32 %v819, %v1002
      %v1036 = vmul.f32 %v821, %v1002
      %v1037 = vmul.f32 %v823, %v1006
      %v1038 = vmul.f32 %v825, %v1006
      %v1039 = vmul.f32 %v827, %v1010
      %v1040 = vmul.f32 %v829, %v1010
      %v1041 = vmul.f32 %v831, %v1014
      %v1042 = vmul.f32 %v833, %v1014
      %v1043 = vmul.f32 %v835, %v1018
      %v1044 = vmul.f32 %v837, %v1018
      %v1045 = vmul.f32 %v839, %v1022
      %v1046 = vmul.f32 %v841, %v1022
      %v1047 = vpack.c.bf16 %v1032, %v1031
      %v1048 = vpack.c.bf16 %v1034, %v1033
      %v1049 = vpack.c.bf16 %v1036, %v1035
      %v1050 = vpack.c.bf16 %v1038, %v1037
      %v1051 = vpack.c.bf16 %v1040, %v1039
      %v1052 = vpack.c.bf16 %v1042, %v1041
      %v1053 = vpack.c.bf16 %v1044, %v1043
      %v1054 = vpack.c.bf16 %v1046, %v1045
      %1056 = vset.pattern.permute.xlu0 0
      %1057 = vperm.xlu0 %1056, %v1047
      %v1058 = vpop.permute.xlu0 %1057
      %1061 = vset.pattern.permute.xlu0 0
      %1062 = vperm.xlu0 %1061, %v1048
      %v1063 = vpop.permute.xlu0 %1062
      %1066 = vset.pattern.permute.xlu0 0
      %1067 = vperm.xlu0 %1066, %v1049
      %v1068 = vpop.permute.xlu0 %1067
      %1071 = vset.pattern.permute.xlu0 0
      %1072 = vperm.xlu0 %1071, %v1050
      %v1073 = vpop.permute.xlu0 %1072
      %1076 = vset.pattern.permute.xlu0 0
      %1077 = vperm.xlu0 %1076, %v1051
      %v1078 = vpop.permute.xlu0 %1077
      %1081 = vset.pattern.permute.xlu0 0
      %1082 = vperm.xlu0 %1081, %v1052
      %v1083 = vpop.permute.xlu0 %1082
      %1086 = vset.pattern.permute.xlu0 0
      %1087 = vperm.xlu0 %1086, %v1053
      %v1088 = vpop.permute.xlu0 %1087
      %1091 = vset.pattern.permute.xlu0 0
      %1092 = vperm.xlu0 %1091, %v1054
      %v1093 = vpop.permute.xlu0 %1092
      %v1111 = vunpack.c.l.b16 %v370
      %v1112 = vunpack.c.l.b16 %v371
      %v1113 = vunpack.c.l.b16 %v372
      %v1114 = vunpack.c.l.b16 %v373
      %v1115 = vunpack.c.l.b16 %v374
      %v1116 = vunpack.c.l.b16 %v375
      %v1117 = vunpack.c.l.b16 %v376
      %v1118 = vunpack.c.l.b16 %v377
      %v1119 = vunpack.c.l.b16 %v378
      %v1120 = vunpack.c.l.b16 %v379
      %v1121 = vunpack.c.l.b16 %v380
      %v1122 = vunpack.c.l.b16 %v381
      %v1123 = vunpack.c.l.b16 %v382
      %v1124 = vunpack.c.l.b16 %v383
      %v1125 = vunpack.c.l.b16 %v384
      %v1126 = vunpack.c.l.b16 %v385
      %v1127 = vpack.c.b16 %v1112, %v1111
      %v1128 = vpack.c.b16 %v1114, %v1113
      %v1129 = vpack.c.b16 %v1116, %v1115
      %v1130 = vpack.c.b16 %v1118, %v1117
      %v1131 = vpack.c.b16 %v1120, %v1119
      %v1132 = vpack.c.b16 %v1122, %v1121
      %v1133 = vpack.c.b16 %v1124, %v1123
      %v1134 = vpack.c.b16 %v1126, %v1125
      %v1143 = vmul.bf16 %v1058, %v1127
      %v1144 = vmul.bf16 %v1063, %v1128
      %v1145 = vmul.bf16 %v1068, %v1129
      %v1146 = vmul.bf16 %v1073, %v1130
      %v1147 = vmul.bf16 %v1078, %v1131
      %v1148 = vmul.bf16 %v1083, %v1132
      %v1149 = vmul.bf16 %v1088, %v1133
      %v1150 = vmul.bf16 %v1093, %v1134
      %v1151 = vunpack.c.l.bf16 %v1143
      %v1152 = vunpack.c.h.bf16 %v1143
      %v1153 = vunpack.c.l.bf16 %v1144
      %v1154 = vunpack.c.h.bf16 %v1144
      %v1155 = vunpack.c.l.bf16 %v1145
      %v1156 = vunpack.c.h.bf16 %v1145
      %v1157 = vunpack.c.l.bf16 %v1146
      %v1158 = vunpack.c.h.bf16 %v1146
      %v1159 = vunpack.c.l.bf16 %v1147
      %v1160 = vunpack.c.h.bf16 %v1147
      %v1161 = vunpack.c.l.bf16 %v1148
      %v1162 = vunpack.c.h.bf16 %v1148
      %v1163 = vunpack.c.l.bf16 %v1149
      %v1164 = vunpack.c.h.bf16 %v1149
      %v1165 = vunpack.c.l.bf16 %v1150
      %v1166 = vunpack.c.h.bf16 %v1150
      %v1167 = vadd.f32 %v1151, %v1152
      %v1168 = vrot.slane %v1167, 4
      %v1169 = vadd.f32 %v1167, %v1168
      %v1170 = vrot.slane %v1169, 2
      %v1171 = vadd.f32 %v1169, %v1170
      %v1172 = vrot.slane %v1171, 1
      %v1173 = vadd.f32 %v1171, %v1172
      %v1174 = vadd.f32 %v1153, %v1154
      %v1175 = vrot.slane %v1174, 4
      %v1176 = vadd.f32 %v1174, %v1175
      %v1177 = vrot.slane %v1176, 2
      %v1178 = vadd.f32 %v1176, %v1177
      %v1179 = vrot.slane %v1178, 1
      %v1180 = vadd.f32 %v1178, %v1179
      %v1181 = vadd.f32 %v1155, %v1156
      %v1182 = vrot.slane %v1181, 4
      %v1183 = vadd.f32 %v1181, %v1182
      %v1184 = vrot.slane %v1183, 2
      %v1185 = vadd.f32 %v1183, %v1184
      %v1186 = vrot.slane %v1185, 1
      %v1187 = vadd.f32 %v1185, %v1186
      %v1188 = vadd.f32 %v1157, %v1158
      %v1189 = vrot.slane %v1188, 4
      %v1190 = vadd.f32 %v1188, %v1189
      %v1191 = vrot.slane %v1190, 2
      %v1192 = vadd.f32 %v1190, %v1191
      %v1193 = vrot.slane %v1192, 1
      %v1194 = vadd.f32 %v1192, %v1193
      %v1195 = vadd.f32 %v1159, %v1160
      %v1196 = vrot.slane %v1195, 4
      %v1197 = vadd.f32 %v1195, %v1196
      %v1198 = vrot.slane %v1197, 2
      %v1199 = vadd.f32 %v1197, %v1198
      %v1200 = vrot.slane %v1199, 1
      %v1201 = vadd.f32 %v1199, %v1200
      %v1202 = vadd.f32 %v1161, %v1162
      %v1203 = vrot.slane %v1202, 4
      %v1204 = vadd.f32 %v1202, %v1203
      %v1205 = vrot.slane %v1204, 2
      %v1206 = vadd.f32 %v1204, %v1205
      %v1207 = vrot.slane %v1206, 1
      %v1208 = vadd.f32 %v1206, %v1207
      %v1209 = vadd.f32 %v1163, %v1164
      %v1210 = vrot.slane %v1209, 4
      %v1211 = vadd.f32 %v1209, %v1210
      %v1212 = vrot.slane %v1211, 2
      %v1213 = vadd.f32 %v1211, %v1212
      %v1214 = vrot.slane %v1213, 1
      %v1215 = vadd.f32 %v1213, %v1214
      %v1216 = vadd.f32 %v1165, %v1166
      %v1217 = vrot.slane %v1216, 4
      %v1218 = vadd.f32 %v1216, %v1217
      %v1219 = vrot.slane %v1218, 2
      %v1220 = vadd.f32 %v1218, %v1219
      %v1221 = vrot.slane %v1220, 1
      %v1222 = vadd.f32 %v1220, %v1221
      %v1223 = vpack.c.bf16 %v1173, %v1173
      %v1224 = vpack.c.bf16 %v1180, %v1180
      %v1225 = vpack.c.bf16 %v1187, %v1187
      %v1226 = vpack.c.bf16 %v1194, %v1194
      %v1227 = vpack.c.bf16 %v1201, %v1201
      %v1228 = vpack.c.bf16 %v1208, %v1208
      %v1229 = vpack.c.bf16 %v1215, %v1215
      %v1230 = vpack.c.bf16 %v1222, %v1222
      %v1231 = vunpack.c.l.bf16 %v1223
      %v1232 = vunpack.c.l.bf16 %v1224
      %v1233 = vunpack.c.l.bf16 %v1225
      %v1234 = vunpack.c.l.bf16 %v1226
      %v1235 = vunpack.c.l.bf16 %v1227
      %v1236 = vunpack.c.l.bf16 %v1228
      %v1237 = vunpack.c.l.bf16 %v1229
      %v1238 = vunpack.c.l.bf16 %v1230
      %v1239 = vunpack.c.l.bf16 %v370
      %v1240 = vunpack.c.l.bf16 %v371
      %v1241 = vunpack.c.l.bf16 %v372
      %v1242 = vunpack.c.l.bf16 %v373
      %v1243 = vunpack.c.l.bf16 %v374
      %v1244 = vunpack.c.l.bf16 %v375
      %v1245 = vunpack.c.l.bf16 %v376
      %v1246 = vunpack.c.l.bf16 %v377
      %v1247 = vunpack.c.l.bf16 %v378
      %v1248 = vunpack.c.l.bf16 %v379
      %v1249 = vunpack.c.l.bf16 %v380
      %v1250 = vunpack.c.l.bf16 %v381
      %v1251 = vunpack.c.l.bf16 %v382
      %v1252 = vunpack.c.l.bf16 %v383
      %v1253 = vunpack.c.l.bf16 %v384
      %v1254 = vunpack.c.l.bf16 %v385
      %v1255 = vadd.f32 %v1239, %v1240
      %v1256 = vrot.slane %v1255, 4
      %v1257 = vadd.f32 %v1255, %v1256
      %v1258 = vrot.slane %v1257, 2
      %v1259 = vadd.f32 %v1257, %v1258
      %v1260 = vrot.slane %v1259, 1
      %v1261 = vadd.f32 %v1259, %v1260
      %v1262 = vadd.f32 %v1241, %v1242
      %v1263 = vrot.slane %v1262, 4
      %v1264 = vadd.f32 %v1262, %v1263
      %v1265 = vrot.slane %v1264, 2
      %v1266 = vadd.f32 %v1264, %v1265
      %v1267 = vrot.slane %v1266, 1
      %v1268 = vadd.f32 %v1266, %v1267
      %v1269 = vadd.f32 %v1243, %v1244
      %v1270 = vrot.slane %v1269, 4
      %v1271 = vadd.f32 %v1269, %v1270
      %v1272 = vrot.slane %v1271, 2
      %v1273 = vadd.f32 %v1271, %v1272
      %v1274 = vrot.slane %v1273, 1
      %v1275 = vadd.f32 %v1273, %v1274
      %v1276 = vadd.f32 %v1245, %v1246
      %v1277 = vrot.slane %v1276, 4
      %v1278 = vadd.f32 %v1276, %v1277
      %v1279 = vrot.slane %v1278, 2
      %v1280 = vadd.f32 %v1278, %v1279
      %v1281 = vrot.slane %v1280, 1
      %v1282 = vadd.f32 %v1280, %v1281
      %v1283 = vadd.f32 %v1247, %v1248
      %v1284 = vrot.slane %v1283, 4
      %v1285 = vadd.f32 %v1283, %v1284
      %v1286 = vrot.slane %v1285, 2
      %v1287 = vadd.f32 %v1285, %v1286
      %v1288 = vrot.slane %v1287, 1
      %v1289 = vadd.f32 %v1287, %v1288
      %v1290 = vadd.f32 %v1249, %v1250
      %v1291 = vrot.slane %v1290, 4
      %v1292 = vadd.f32 %v1290, %v1291
      %v1293 = vrot.slane %v1292, 2
      %v1294 = vadd.f32 %v1292, %v1293
      %v1295 = vrot.slane %v1294, 1
      %v1296 = vadd.f32 %v1294, %v1295
      %v1297 = vadd.f32 %v1251, %v1252
      %v1298 = vrot.slane %v1297, 4
      %v1299 = vadd.f32 %v1297, %v1298
      %v1300 = vrot.slane %v1299, 2
      %v1301 = vadd.f32 %v1299, %v1300
      %v1302 = vrot.slane %v1301, 1
      %v1303 = vadd.f32 %v1301, %v1302
      %v1304 = vadd.f32 %v1253, %v1254
      %v1305 = vrot.slane %v1304, 4
      %v1306 = vadd.f32 %v1304, %v1305
      %v1307 = vrot.slane %v1306, 2
      %v1308 = vadd.f32 %v1306, %v1307
      %v1309 = vrot.slane %v1308, 1
      %v1310 = vadd.f32 %v1308, %v1309
      %v1311 = vpack.c.bf16 %v1261, %v1261
      %v1312 = vpack.c.bf16 %v1268, %v1268
      %v1313 = vpack.c.bf16 %v1275, %v1275
      %v1314 = vpack.c.bf16 %v1282, %v1282
      %v1315 = vpack.c.bf16 %v1289, %v1289
      %v1316 = vpack.c.bf16 %v1296, %v1296
      %v1317 = vpack.c.bf16 %v1303, %v1303
      %v1318 = vpack.c.bf16 %v1310, %v1310
      %v1319 = vunpack.c.l.bf16 %v1311
      %v1320 = vunpack.c.l.bf16 %v1312
      %v1321 = vunpack.c.l.bf16 %v1313
      %v1322 = vunpack.c.l.bf16 %v1314
      %v1323 = vunpack.c.l.bf16 %v1315
      %v1324 = vunpack.c.l.bf16 %v1316
      %v1325 = vunpack.c.l.bf16 %v1317
      %v1326 = vunpack.c.l.bf16 %v1318
      %v1327 = vld [vmem:[%s365] sm:$0xff]
      %1329 = vset.pattern.permute.xlu0 0
      %1330 = vperm.xlu0 %1329, %v1327
      %v1331 = vpop.permute.xlu0 %1330
      %v1332 = vrot.slane %v1331, 1
      %v1333 = vrot.slane %v1331, 2
      %v1334 = vrot.slane %v1331, 3
      %v1335 = vrot.slane %v1331, 4
      %v1336 = vrot.slane %v1331, 5
      %v1337 = vrot.slane %v1331, 6
      %v1338 = vrot.slane %v1331, 7
      %v1347 = vmul.f32 %v1319, %v1331
      %v1348 = vmul.f32 %v1320, %v1332
      %v1349 = vmul.f32 %v1321, %v1333
      %v1350 = vmul.f32 %v1322, %v1334
      %v1351 = vmul.f32 %v1323, %v1335
      %v1352 = vmul.f32 %v1324, %v1336
      %v1353 = vmul.f32 %v1325, %v1337
      %v1354 = vmul.f32 %v1326, %v1338
      %v1363 = vsel %vm734, %v1232, %v1231
      %v1364 = vsel %vm736, %v1233, %v1363
      %v1365 = vsel %vm738, %v1234, %v1364
      %v1366 = vsel %vm740, %v1235, %v1365
      %v1367 = vsel %vm742, %v1236, %v1366
      %v1368 = vsel %vm744, %v1237, %v1367
      %v1369 = vsel %vm746, %v1238, %v1368
      %v1379 = vrot.slane %v1348, 7
      %v1380 = vsel %vm734, %v1379, %v1347
      %v1381 = vrot.slane %v1349, 6
      %v1382 = vsel %vm736, %v1381, %v1380
      %v1383 = vrot.slane %v1350, 5
      %v1384 = vsel %vm738, %v1383, %v1382
      %v1385 = vrot.slane %v1351, 4
      %v1386 = vsel %vm740, %v1385, %v1384
      %v1387 = vrot.slane %v1352, 3
      %v1388 = vsel %vm742, %v1387, %v1386
      %v1389 = vrot.slane %v1353, 2
      %v1390 = vsel %vm744, %v1389, %v1388
      %v1391 = vrot.slane %v1354, 1
      %v1392 = vsel %vm746, %v1391, %v1390
      %v1394 = vld [vmem:[%s5] sm:$0xff]
      %v1395 = vld [vmem:[%s5 + $0x8] sm:$0xff]
      %v1396 = vld [vmem:[%s5 + $0x10] sm:$0xff]
      %v1397 = vld [vmem:[%s5 + $0x18] sm:$0xff]
      %v1398 = vld [vmem:[%s5 + $0x20] sm:$0xff]
      %v1399 = vld [vmem:[%s5 + $0x28] sm:$0xff]
      %v1400 = vld [vmem:[%s5 + $0x30] sm:$0xff]
      %v1401 = vld [vmem:[%s5 + $0x38] sm:$0xff]
      %v1402 = vld [vmem:[%s5 + $0x40] sm:$0xff]
      %v1403 = vld [vmem:[%s5 + $0x48] sm:$0xff]
      %v1404 = vld [vmem:[%s5 + $0x50] sm:$0xff]
      %v1405 = vld [vmem:[%s5 + $0x58] sm:$0xff]
      %v1406 = vld [vmem:[%s5 + $0x60] sm:$0xff]
      %v1407 = vld [vmem:[%s5 + $0x68] sm:$0xff]
      %v1408 = vld [vmem:[%s5 + $0x70] sm:$0xff]
      %v1409 = vld [vmem:[%s5 + $0x78] sm:$0xff]
      %v1410 = vld [vmem:[%s5 + $0x80] sm:$0xff]
      %v1411 = vld [vmem:[%s5 + $0x88] sm:$0xff]
      %v1412 = vld [vmem:[%s5 + $0x90] sm:$0xff]
      %v1413 = vld [vmem:[%s5 + $0x98] sm:$0xff]
      %v1414 = vld [vmem:[%s5 + $0xa0] sm:$0xff]
      %v1415 = vld [vmem:[%s5 + $0xa8] sm:$0xff]
      %v1416 = vld [vmem:[%s5 + $0xb0] sm:$0xff]
      %v1417 = vld [vmem:[%s5 + $0xb8] sm:$0xff]
      %v1418 = vld [vmem:[%s5 + $0xc0] sm:$0xff]
      %v1419 = vld [vmem:[%s5 + $0xc8] sm:$0xff]
      %v1420 = vld [vmem:[%s5 + $0xd0] sm:$0xff]
      %v1421 = vld [vmem:[%s5 + $0xd8] sm:$0xff]
      %v1422 = vld [vmem:[%s5 + $0xe0] sm:$0xff]
      %v1423 = vld [vmem:[%s5 + $0xe8] sm:$0xff]
      %v1424 = vld [vmem:[%s5 + $0xf0] sm:$0xff]
      %v1425 = vld [vmem:[%s5 + $0xf8] sm:$0xff]
      %v1426 = vld [vmem:[%s6] sm:$0x1]
      %v1428 = vlaneseq
      %v1429 = vshrl.u32 %v1428, 7
      %v1430 = vsub.s32 0, %v1429
      %v1431 = vrot.slane %v1426, %v1430
      %1433 = vmatprep.subr.mxu0 0.0
      %1434 = vmatpush1.msra.mxu0 %v1394
      %1435 = vmatprep.subr.mxu0 0.0
      %1436 = vmatpush1.msra.mxu0 %v1395
      %1437 = vmatprep.subr.mxu0 0.0
      %1438 = vmatpush1.msra.mxu0 %v1396
      %1439 = vmatprep.subr.mxu0 0.0
      %1440 = vmatpush1.msra.mxu0 %v1397
      %1441 = vmatprep.subr.mxu0 0.0
      %1442 = vmatpush1.msra.mxu0 %v1398
      %1443 = vmatprep.subr.mxu0 0.0
      %1444 = vmatpush1.msra.mxu0 %v1399
      %1445 = vmatprep.subr.mxu0 0.0
      %1446 = vmatpush1.msra.mxu0 %v1400
      %1447 = vmatprep.subr.mxu0 0.0
      %1448 = vmatpush1.msra.mxu0 %v1401
      %1449 = vmatprep.subr.mxu0 0.0
      %1450 = vmatpush1.msra.mxu0 %v1402
      %1451 = vmatprep.subr.mxu0 0.0
      %1452 = vmatpush1.msra.mxu0 %v1403
      %1453 = vmatprep.subr.mxu0 0.0
      %1454 = vmatpush1.msra.mxu0 %v1404
      %1455 = vmatprep.subr.mxu0 0.0
      %1456 = vmatpush1.msra.mxu0 %v1405
      %1457 = vmatprep.subr.mxu0 0.0
      %1458 = vmatpush1.msra.mxu0 %v1406
      %1459 = vmatprep.subr.mxu0 0.0
      %1460 = vmatpush1.msra.mxu0 %v1407
      %1461 = vmatprep.subr.mxu0 0.0
      %1462 = vmatpush1.msra.mxu0 %v1408
      %1463 = vmatprep.subr.mxu0 0.0
      %1464 = vmatpush1.msra.mxu0 %v1409
      %1465 = vmatprep.subr.mxu0 0.0
      %1466 = vmatpush1.msra.mxu0 %v1410
      %1467 = vmatprep.subr.mxu0 0.0
      %1468 = vmatpush1.msra.mxu0 %v1411
      %1469 = vmatprep.subr.mxu0 0.0
      %1470 = vmatpush1.msra.mxu0 %v1412
      %1471 = vmatprep.subr.mxu0 0.0
      %1472 = vmatpush1.msra.mxu0 %v1413
      %1473 = vmatprep.subr.mxu0 0.0
      %1474 = vmatpush1.msra.mxu0 %v1414
      %1475 = vmatprep.subr.mxu0 0.0
      %1476 = vmatpush1.msra.mxu0 %v1415
      %1477 = vmatprep.subr.mxu0 0.0
      %1478 = vmatpush1.msra.mxu0 %v1416
      %1479 = vmatprep.subr.mxu0 0.0
      %1480 = vmatpush1.msra.mxu0 %v1417
      %1481 = vmatprep.subr.mxu0 0.0
      %1482 = vmatpush1.msra.mxu0 %v1418
      %1483 = vmatprep.subr.mxu0 0.0
      %1484 = vmatpush1.msra.mxu0 %v1419
      %1485 = vmatprep.subr.mxu0 0.0
      %1486 = vmatpush1.msra.mxu0 %v1420
      %1487 = vmatprep.subr.mxu0 0.0
      %1488 = vmatpush1.msra.mxu0 %v1421
      %1489 = vmatprep.subr.mxu0 0.0
      %1490 = vmatpush1.msra.mxu0 %v1422
      %1491 = vmatprep.subr.mxu0 0.0
      %1492 = vmatpush1.msra.mxu0 %v1423
      %1493 = vmatprep.subr.mxu0 0.0
      %1494 = vmatpush1.msra.mxu0 %v1424
      %1495 = vmatprep.subr.mxu0 0.0
      %1496 = vmatpush1.msra.mxu0 %v1425
      %1497 = vmatprep.mubr.f32.mxu0 %v1392
      %1498 = vmatmul.mubr.f32.gmra.mrb[0].mxu0 %v1369
      %v1499 = vpop.f32.mrb[0].mxu0
      %v1500 = vadd.f32 %v1431, %v1499
      %v1501 = vpop.f32.mrb[0].mxu0
      %1502 = vdwg.mxu0
      %v1503 = vtanh.pop %v1500
      %v1504 = vld [vmem:[%s7] sm:$0xff]
      %v1505 = vld [vmem:[%s7 + $0x8] sm:$0xff]
      %v1506 = vld [vmem:[%s7 + $0x10] sm:$0xff]
      %v1507 = vld [vmem:[%s7 + $0x18] sm:$0xff]
      %v1508 = vld [vmem:[%s7 + $0x20] sm:$0xff]
      %v1509 = vld [vmem:[%s7 + $0x28] sm:$0xff]
      %v1510 = vld [vmem:[%s7 + $0x30] sm:$0xff]
      %v1511 = vld [vmem:[%s7 + $0x38] sm:$0xff]
      %v1512 = vld [vmem:[%s7 + $0x40] sm:$0xff]
      %v1513 = vld [vmem:[%s7 + $0x48] sm:$0xff]
      %v1514 = vld [vmem:[%s7 + $0x50] sm:$0xff]
      %v1515 = vld [vmem:[%s7 + $0x58] sm:$0xff]
      %v1516 = vld [vmem:[%s7 + $0x60] sm:$0xff]
      %v1517 = vld [vmem:[%s7 + $0x68] sm:$0xff]
      %v1518 = vld [vmem:[%s7 + $0x70] sm:$0xff]
      %v1519 = vld [vmem:[%s7 + $0x78] sm:$0xff]
      %v1520 = vld [vmem:[%s8] sm:$0x1]
      %v1522 = vlaneseq
      %v1523 = vshrl.u32 %v1522, 7
      %v1524 = vsub.s32 0, %v1523
      %v1525 = vrot.slane %v1520, %v1524
      %1527 = vmatprep.subr.mxu0 0.0
      %1528 = vmatpush1.msra.mxu0 %v1504
      %1529 = vmatprep.subr.mxu0 0.0
      %1530 = vmatpush1.msra.mxu0 %v1505
      %1531 = vmatprep.subr.mxu0 0.0
      %1532 = vmatpush1.msra.mxu0 %v1506
      %1533 = vmatprep.subr.mxu0 0.0
      %1534 = vmatpush1.msra.mxu0 %v1507
      %1535 = vmatprep.subr.mxu0 0.0
      %1536 = vmatpush1.msra.mxu0 %v1508
      %1537 = vmatprep.subr.mxu0 0.0
      %1538 = vmatpush1.msra.mxu0 %v1509
      %1539 = vmatprep.subr.mxu0 0.0
      %1540 = vmatpush1.msra.mxu0 %v1510
      %1541 = vmatprep.subr.mxu0 0.0
      %1542 = vmatpush1.msra.mxu0 %v1511
      %1543 = vmatprep.subr.mxu0 0.0
      %1544 = vmatpush1.msra.mxu0 %v1512
      %1545 = vmatprep.subr.mxu0 0.0
      %1546 = vmatpush1.msra.mxu0 %v1513
      %1547 = vmatprep.subr.mxu0 0.0
      %1548 = vmatpush1.msra.mxu0 %v1514
      %1549 = vmatprep.subr.mxu0 0.0
      %1550 = vmatpush1.msra.mxu0 %v1515
      %1551 = vmatprep.subr.mxu0 0.0
      %1552 = vmatpush1.msra.mxu0 %v1516
      %1553 = vmatprep.subr.mxu0 0.0
      %1554 = vmatpush1.msra.mxu0 %v1517
      %1555 = vmatprep.subr.mxu0 0.0
      %1556 = vmatpush1.msra.mxu0 %v1518
      %1557 = vmatprep.subr.mxu0 0.0
      %1558 = vmatpush1.msra.mxu0 %v1519
      %1559 = vmatprep.subr.mxu0 0.0
      %1560 = vmatpush1.msra.mxu0 0.0
      %1561 = vmatprep.subr.mxu0 0.0
      %1562 = vmatpush1.msra.mxu0 0.0
      %1563 = vmatprep.subr.mxu0 0.0
      %1564 = vmatpush1.msra.mxu0 0.0
      %1565 = vmatprep.subr.mxu0 0.0
      %1566 = vmatpush1.msra.mxu0 0.0
      %1567 = vmatprep.subr.mxu0 0.0
      %1568 = vmatpush1.msra.mxu0 0.0
      %1569 = vmatprep.subr.mxu0 0.0
      %1570 = vmatpush1.msra.mxu0 0.0
      %1571 = vmatprep.subr.mxu0 0.0
      %1572 = vmatpush1.msra.mxu0 0.0
      %1573 = vmatprep.subr.mxu0 0.0
      %1574 = vmatpush1.msra.mxu0 0.0
      %1575 = vmatprep.subr.mxu0 0.0
      %1576 = vmatpush1.msra.mxu0 0.0
      %1577 = vmatprep.subr.mxu0 0.0
      %1578 = vmatpush1.msra.mxu0 0.0
      %1579 = vmatprep.subr.mxu0 0.0
      %1580 = vmatpush1.msra.mxu0 0.0
      %1581 = vmatprep.subr.mxu0 0.0
      %1582 = vmatpush1.msra.mxu0 0.0
      %1583 = vmatprep.subr.mxu0 0.0
      %1584 = vmatpush1.msra.mxu0 0.0
      %1585 = vmatprep.subr.mxu0 0.0
      %1586 = vmatpush1.msra.mxu0 0.0
      %1587 = vmatprep.subr.mxu0 0.0
      %1588 = vmatpush1.msra.mxu0 0.0
      %1589 = vmatprep.subr.mxu0 0.0
      %1590 = vmatpush1.msra.mxu0 0.0
      %1591 = vmatprep.mubr.f32.mxu0 0.0
      %1592 = vmatmul.mubr.f32.gmra.mrb[0].mxu0 %v1503
      %v1593 = vpop.f32.mrb[0].mxu0
      %v1594 = vadd.f32 %v1525, %v1593
      %v1595 = vpop.f32.mrb[0].mxu0
      %1596 = vdwg.mxu0
      %1597 = vmax.xlane.f32.xlu0 %v1594
      %v1598 = vpop.xlane.xlu0 %1597
      %v1599 = vsub.f32 %v1594, %v1598
      %v1600 = vmul.f32 %v1599, 1.442695
      %v1601 = vpow.pop %v1600
      %1602 = vadd.xlane.f32.xlu0 %v1601
      %v1603 = vpop.xlane.xlu0 %1602
      %v1604 = vrcp.pop %v1603
      %v1605 = vmul.f32 %v1601, %v1604
      %1606 = vst [vmem:[%s369] sm:$0xff] %v1605
      %p1607 = scmp.lt.s32.totalorder %s20, 1
      %s1608 = scalar_select %p1607, %s20, 1
      %s1609 = smul.addr %s1608, 8
      %s1610 = scalar_lea.vmem %s9, %s1609
      // Predicated region
      $region57: #{cabasc_forward.1} parent=55 // pred_check
        %p1611 = pneg %p242
      $region58: #{cabasc_forward.1} parent=55 // pred_check_branch
        %1613 = sbr.rel (%p1611) target = $region60
      $region59: #{cabasc_forward.1} parent=55 // pred_region
        _
      $region60: #{cabasc_forward.1} parent=55 // pred_fallthru
        _
    $region56: #{cabasc_forward.1} parent=5 // pred_fallthru
      _
    %p1614 = scmp.le.s32.totalorder 2, %s15
    // Predicated region
    $region61: #{cabasc_forward.1} parent=5 // pred_check
      %p1615 = pneg %p1614
    $region62: #{cabasc_forward.1} parent=5 // pred_check_branch
      %1617 = sbr.rel (%p1615) target = $region64
    $region63: #{cabasc_forward.1} parent=5 // pred_region
      %s1618 = ssub.s32 %s15, 2
      // Predicated region
      $region65: #{cabasc_forward.1} parent=63 // pred_check
        %p1619 = pneg %p248
      $region66: #{cabasc_forward.1} parent=63 // pred_check_branch
        %1621 = sbr.rel (%p1619) target = $region68
      $region67: #{cabasc_forward.1} parent=63 // pred_region
        %p1622 = scmp.lt.s32.totalorder %s21, 1
        %s1623 = scalar_select %p1622, %s21, 1
        %s1624 = smul.addr %s1623, 8
        %s1625 = scalar_lea.vmem %s9, %s1624
      $region68: #{cabasc_forward.1} parent=63 // pred_fallthru
        _
    $region64: #{cabasc_forward.1} parent=5 // pred_fallthru
      _
  $region6: #{cabasc_forward.1} parent=0 // loop_footer
    %s19 = sadd.s32 1, %s15
  $region7: #{cabasc_forward.1} parent=0 // loop_footer_branch
    %14 = sbr.rel target = $region3
  $region8: #{cabasc_forward.1} parent=0 // loop_exit
    _

</llo_original>
